<compile_context>
chip_gen: v5e
topology: v5e:2x2
jax: 0.10.0
libtpu: 0.0.40
codegen_flags: <defaults>
</compile_context>

<pallas_src>
import functools
import math

import jax
import jax.numpy as jnp
from jax import lax
from jax.experimental import pallas as pl
from jax.experimental.pallas import tpu as pltpu


_VMEM = pl.BlockSpec(memory_space=pltpu.MemorySpace.VMEM)


# --------------------------------------------------------------------------
# Fused kernel: GraphEncoder + MemModule + attr_Decoder + stru_Decoder
# --------------------------------------------------------------------------

def _gnnet_kernel(x_ref, adj_ref, wf_ref, bf_ref, wb_ref, bb_ref,
                  wl_ref, bl_ref, wn_ref, wg_ref, w1t_ref, w2t_ref,
                  big_ref, small_ref, ne_scr, on_scr, *, lam_n, lam_g):
    B, N, Din = x_ref.shape
    H = wf_ref.shape[1]
    E = wl_ref.shape[1]
    Mn = wn_ref.shape[1]                 # wn_ref: [N, Mn, E] (pre-transposed)
    Mg = wg_ref.shape[0]
    Hd = w1t_ref.shape[1]

    adj = adj_ref[...]                                          # [B, N, N]

    def bmm(a, b):                                              # [B,N,K]@[B,K,D]
        return lax.dot_general(a, b, (((2,), (1,)), ((0,), (0,))),
                               preferred_element_type=jnp.float32)

    def graph_conv(h3, w, b):
        """GraphConv(add_self=True, bias=True, normalize_embedding=True).
        h3: [B, N, Din] -> [B*N, Dout] (row L2-normalized)."""
        y3 = bmm(adj, h3) + h3                                  # adj @ x (+self)
        din = h3.shape[-1]
        y2 = jnp.dot(y3.reshape(B * N, din), w,
                     preferred_element_type=jnp.float32) + b    # [B*N, Dout]
        # F.normalize(p=2, dim=2): y / max(||y||_2, 1e-12)
        ssq = jnp.sum(y2 * y2, axis=-1, keepdims=True)
        return y2 * lax.rsqrt(jnp.maximum(ssq, 1e-24))

    def relu_bn(h2, dout):
        """ReLU then a fresh nn.BatchNorm1d(N) in training mode on [B,N,dout]:
        per-node stats over (batch, feature), weight=1, bias=0, eps=1e-5."""
        h3 = jnp.maximum(h2, 0.0).reshape(B, N, dout)
        inv_cnt = 1.0 / (B * dout)
        s = jnp.sum(jnp.sum(h3, axis=2, keepdims=True), axis=0, keepdims=True)
        mu = s * inv_cnt                                        # [1, N, 1]
        d = h3 - mu
        v = jnp.sum(jnp.sum(d * d, axis=2, keepdims=True), axis=0, keepdims=True)
        return d * lax.rsqrt(v * inv_cnt + 1e-5)                # [B, N, dout]

    # ---- GraphEncoder (num_layers=3, concat=False, bn=True, bias=True) ----
    h = graph_conv(x_ref[...], wf_ref[...], bf_ref[...])        # conv_first
    h = relu_bn(h, H)
    h = graph_conv(h, wb_ref[...], bb_ref[...])                 # conv_block[0]
    h = relu_bn(h, H)
    ne2 = graph_conv(h, wl_ref[...], bl_ref[...])               # conv_last [B*N,E]
    ne_scr[...] = ne2.reshape(B, N, E)                          # node_embed [B,N,E]

    # ---- MemModule: node attention scores + graph mean in one unrolled pass
    #      over nodes (N small 2-D matmuls; avoids any lane<->sublane reshape).
    ge = jnp.zeros((B, E), jnp.float32)
    score_n = jnp.zeros((B, Mn), jnp.float32)
    for n in range(N):
        ne_n = ne_scr[:, n, :]                                  # [B, E]
        ge = ge + ne_n
        score_n = score_n + lax.dot_general(
            ne_n, wn_ref[n], (((1,), (1,)), ((), ())),
            preferred_element_type=jnp.float32)                 # [B, Mn]
    ge = ge * (1.0 / N)                                         # graph_embed [B,E]

    def mem_attention(score, lam):
        # softmax over memory slots
        score = score - jnp.max(score, axis=1, keepdims=True)
        e = jnp.exp(score)
        att = e / jnp.sum(e, axis=1, keepdims=True)
        # hard_shrink_relu(att, lambd=lam, eps=1e-12)
        att = jnp.maximum(att - lam, 0.0) * att / (jnp.abs(att - lam) + 1e-12)
        # F.normalize(p=1, dim=1)
        return att / jnp.maximum(
            jnp.sum(jnp.abs(att), axis=1, keepdims=True), 1e-12)

    att_n = mem_attention(score_n, lam_n)                       # [B, Mn]
    score_g = lax.dot_general(ge, wg_ref[...], (((1,), (1,)), ((), ())),
                              preferred_element_type=jnp.float32)
    att_g = mem_attention(score_g, lam_g)                       # [B, Mg]
    out_g = jnp.dot(att_g, wg_ref[...],
                    preferred_element_type=jnp.float32)         # [B, E]

    # output_node = einsum('bm,mne->bne'), assembled per node into VMEM scratch.
    for n in range(N):
        on_scr[:, n, :] = jnp.dot(att_n, wn_ref[n],
                                  preferred_element_type=jnp.float32)
    on3 = on_scr[...]                                           # [B, N, E]

    # ---- attr_Decoder: gc2(adj @ leaky_relu(gc1(adj @ x))), no biases ----
    # TODO(synk): attr_Decoder defines Dropout(p) but never applies it; omitted.
    t = bmm(adj, on3)                                           # [B, N, E]
    t = jnp.dot(t.reshape(B * N, E), w1t_ref[...],
                preferred_element_type=jnp.float32)             # [B*N, Hd]
    t = jnp.where(t >= 0, t, 0.01 * t)                          # LeakyReLU(0.01)
    t = bmm(adj, t.reshape(B, N, Hd))                           # [B, N, Hd]
    recon_node = jnp.dot(t.reshape(B * N, Hd), w2t_ref[...],
                         preferred_element_type=jnp.float32)    # [B*N, Din]

    # ---- stru_Decoder: ReLU(x @ x^T) ----
    ra = lax.dot_general(on3, on3, (((2,), (2,)), ((0,), (0,))),
                         preferred_element_type=jnp.float32)    # [B, N, N]
    ra = jnp.maximum(ra, 0.0)

    # ---- lane-dense packed outputs (sliced apart on the host) ----
    big_ref[:, 0:Din] = recon_node
    big_ref[:, Din:Din + N] = ra.reshape(B * N, N)
    small_ref[:, 0:Mn] = att_n
    small_ref[:, Mn:Mn + Mg] = att_g
    small_ref[:, Mn + Mg:Mn + Mg + E] = ge
    small_ref[:, Mn + Mg + E:Mn + Mg + 2 * E] = out_g


# --------------------------------------------------------------------------
# Wrapper
# --------------------------------------------------------------------------

def gnnet_forward(x, adj, kp):
    B, N, Din = x.shape
    E = kp["w_last"].shape[1]
    Mn = kp["w_mem_node_t"].shape[1]
    Mg = kp["w_mem_graph"].shape[0]

    big, small = pl.pallas_call(
        functools.partial(_gnnet_kernel, lam_n=0.2 / Mn, lam_g=0.2 / Mg),
        out_shape=(jax.ShapeDtypeStruct((B * N, Din + N), jnp.float32),
                   jax.ShapeDtypeStruct((B, Mn + Mg + 2 * E), jnp.float32)),
        in_specs=[_VMEM] * 12,
        out_specs=(_VMEM, _VMEM),
        scratch_shapes=[pltpu.VMEM((B, N, E), jnp.float32),   # node_embed
                        pltpu.VMEM((B, N, E), jnp.float32)],  # output_node
        compiler_params=pltpu.CompilerParams(
            vmem_limit_bytes=48 * 1024 * 1024),
    )(x, adj,
      kp["w_first"], kp["b_first"], kp["w_block"], kp["b_block"],
      kp["w_last"], kp["b_last"], kp["w_mem_node_t"], kp["w_mem_graph"],
      kp["w_dec1_t"], kp["w_dec2_t"])

    recon_node = big[:, :Din].reshape(B, N, Din)
    recon_adj = big[:, Din:].reshape(B, N, N)
    att_node = small[:, :Mn]
    att_graph = small[:, Mn:Mn + Mg]
    graph_embed = small[:, Mn + Mg:Mn + Mg + E]
    out_graph = small[:, Mn + Mg + E:]
    return recon_node, recon_adj, att_node, att_graph, graph_embed, out_graph


# --------------------------------------------------------------------------
# Parameter init (mirrors the PyTorch module) and one-time layout prep
# --------------------------------------------------------------------------

def init_params(key, input_dim, hidden_dim, embedding_dim, node_num,
                mem_num_node, mem_num_graph):
    ks = jax.random.split(key, 7)

    def kaiming(k, shape):
        # kaiming_uniform_(mode='fan_in', nonlinearity='relu') on a weight
        # stored [in, out] -> PyTorch computes fan_in = size(1) = out.
        fan_in = shape[1]
        bound = math.sqrt(2.0) * math.sqrt(3.0 / fan_in)
        return jax.random.uniform(k, shape, jnp.float32, -bound, bound)

    def unif(k, shape, stdv):
        return jax.random.uniform(k, shape, jnp.float32, -stdv, stdv)

    return dict(
        # GraphConv weights [in, out], biases init.constant(0.0)
        w_first=kaiming(ks[0], (input_dim, hidden_dim)),
        b_first=jnp.zeros((hidden_dim,), jnp.float32),
        w_block=kaiming(ks[1], (hidden_dim, hidden_dim)),
        b_block=jnp.zeros((hidden_dim,), jnp.float32),
        w_last=kaiming(ks[2], (hidden_dim, embedding_dim)),
        b_last=jnp.zeros((embedding_dim,), jnp.float32),
        # MemModule (PyTorch layouts)
        w_mem_node=unif(ks[3], (mem_num_node, node_num, embedding_dim),
                        1.0 / math.sqrt(node_num)),
        w_mem_graph=unif(ks[4], (mem_num_graph, embedding_dim),
                         1.0 / math.sqrt(embedding_dim)),
        # attr_Decoder linears, nn.Linear layout [out, in], no bias
        w_dec1=unif(ks[5], (hidden_dim, embedding_dim),
                    1.0 / math.sqrt(embedding_dim)),
        w_dec2=unif(ks[6], (input_dim, hidden_dim),
                    1.0 / math.sqrt(hidden_dim)),
    )


def prepare_kernel_params(params):
    """One-time layout prep, kept out of the per-call jit path."""
    H = params["w_first"].shape[1]
    E = params["w_last"].shape[1]
    return dict(
        w_first=params["w_first"], b_first=params["b_first"].reshape(1, H),
        w_block=params["w_block"], b_block=params["b_block"].reshape(1, H),
        w_last=params["w_last"], b_last=params["b_last"].reshape(1, E),
        w_mem_node_t=jnp.transpose(params["w_mem_node"], (1, 0, 2)),  # [N,Mn,E]
        w_mem_graph=params["w_mem_graph"],
        w_dec1_t=params["w_dec1"].T,                                  # [E, H]
        w_dec2_t=params["w_dec2"].T,                                  # [H, Din]
    )


if __name__ == "__main__":
    B, N = 2, 8                               # batch, num_nodes
    input_dim, hidden_dim, embedding_dim = 16, 32, 16
    mem_num_node, mem_num_graph = 10, 6       # num_layers=3 -> 1 conv_block layer

    key = jax.random.PRNGKey(0)
    kx, ka, kparam = jax.random.split(key, 3)
    x = jax.random.normal(kx, (B, N, input_dim), jnp.float32)
    a = jax.random.uniform(ka, (B, N, N), jnp.float32)
    adj = 0.5 * (a + jnp.transpose(a, (0, 2, 1)))      # symmetric dense adjacency

    params = init_params(kparam, input_dim, hidden_dim, embedding_dim, N,
                         mem_num_node, mem_num_graph)
    kparams = prepare_kernel_params(params)

    fwd = jax.jit(gnnet_forward)
    outs = fwd(x, adj, kparams)
    jax.block_until_ready(outs)

    recon_node, recon_adj, att_node, att_graph, graph_embed, out_graph = outs
    assert recon_node.shape == (B, N, input_dim)
    assert recon_adj.shape == (B, N, N)
    assert att_node.shape == (B, mem_num_node)
    assert att_graph.shape == (B, mem_num_graph)
    assert graph_embed.shape == (B, embedding_dim)
    assert out_graph.shape == (B, embedding_dim)
    assert bool(jnp.all(jnp.isfinite(recon_node)))
    assert bool(jnp.all(jnp.isfinite(recon_adj)))
    print("KERNEL_OK")
</pallas_src>

<mosaic_0001>
module attributes {stable_mosaic.version = 11 : i64} {
  func.func @_gnnet_kernel(%arg0: memref<2x8x16xf32, #tpu.memory_space<vmem>>, %arg1: memref<2x8x8xf32, #tpu.memory_space<vmem>>, %arg2: memref<16x32xf32, #tpu.memory_space<vmem>>, %arg3: memref<1x32xf32, #tpu.memory_space<vmem>>, %arg4: memref<32x32xf32, #tpu.memory_space<vmem>>, %arg5: memref<1x32xf32, #tpu.memory_space<vmem>>, %arg6: memref<32x16xf32, #tpu.memory_space<vmem>>, %arg7: memref<1x16xf32, #tpu.memory_space<vmem>>, %arg8: memref<8x10x16xf32, #tpu.memory_space<vmem>>, %arg9: memref<6x16xf32, #tpu.memory_space<vmem>>, %arg10: memref<16x32xf32, #tpu.memory_space<vmem>>, %arg11: memref<32x16xf32, #tpu.memory_space<vmem>>, %arg12: memref<16x24xf32, #tpu.memory_space<vmem>>, %arg13: memref<2x48xf32, #tpu.memory_space<vmem>>, %arg14: memref<2x8x16xf32, #tpu.memory_space<vmem>>, %arg15: memref<2x8x16xf32, #tpu.memory_space<vmem>>) attributes {dimension_semantics = [], scalar_prefetch = 0 : i64, scratch_operands = 2 : i64, tpu.core_type = #tpu.core_type<tc>} {
    %c0 = arith.constant 0 : index
    %c0_0 = arith.constant 0 : index
    %c0_1 = arith.constant 0 : index
    %0 = vector.load %arg1[%c0, %c0_0, %c0_1] : memref<2x8x8xf32, #tpu.memory_space<vmem>>, vector<2x8x8xf32>
    %c0_2 = arith.constant 0 : index
    %c0_3 = arith.constant 0 : index
    %c0_4 = arith.constant 0 : index
    %1 = vector.load %arg0[%c0_2, %c0_3, %c0_4] : memref<2x8x16xf32, #tpu.memory_space<vmem>>, vector<2x8x16xf32>
    %c0_5 = arith.constant 0 : index
    %c0_6 = arith.constant 0 : index
    %2 = vector.load %arg2[%c0_5, %c0_6] : memref<16x32xf32, #tpu.memory_space<vmem>>, vector<16x32xf32>
    %c0_7 = arith.constant 0 : index
    %c0_8 = arith.constant 0 : index
    %3 = vector.load %arg3[%c0_7, %c0_8] : memref<1x32xf32, #tpu.memory_space<vmem>>, vector<1x32xf32>
    %cst = arith.constant dense<0.000000e+00> : vector<2x8x16xf32>
    %4 = tpu.matmul %0, %1, %cst {dimension_numbers = #tpu.dot_dimension_numbers<[2], [1], [1], [2], [0, 0, 0, 1, 1, 2], [0], [0]>} : vector<2x8x8xf32>, vector<2x8x16xf32>, vector<2x8x16xf32> -> vector<2x8x16xf32>
    %5 = arith.addf %4, %1 : vector<2x8x16xf32>
    %6 = vector.shape_cast %5 : vector<2x8x16xf32> to vector<16x16xf32>
    %cst_9 = arith.constant dense<0.000000e+00> : vector<16x32xf32>
    %7 = tpu.matmul %6, %2, %cst_9 {dimension_numbers = #tpu.dot_dimension_numbers<[1], [0], [0], [1], [0, 0, 1, 1], [], []>} : vector<16x16xf32>, vector<16x32xf32>, vector<16x32xf32> -> vector<16x32xf32>
    %8 = vector.broadcast %3 : vector<1x32xf32> to vector<16x32xf32>
    %9 = arith.addf %7, %8 : vector<16x32xf32>
    %10 = arith.mulf %9, %9 : vector<16x32xf32>
    %cst_10 = arith.constant dense<0.000000e+00> : vector<16xf32>
    %11 = vector.multi_reduction <add>, %10, %cst_10 [1] : vector<16x32xf32> to vector<16xf32>
    %12 = vector.shape_cast %11 : vector<16xf32> to vector<16x1xf32>
    %cst_11 = arith.constant 1.000000e-24 : f32
    %13 = vector.broadcast %cst_11 : f32 to vector<16x1xf32>
    %14 = arith.maximumf %12, %13 : vector<16x1xf32>
    %15 = math.rsqrt %14 : vector<16x1xf32>
    %16 = vector.broadcast %15 : vector<16x1xf32> to vector<16x32xf32>
    %17 = arith.mulf %9, %16 : vector<16x32xf32>
    %cst_12 = arith.constant 0.000000e+00 : f32
    %18 = vector.broadcast %cst_12 : f32 to vector<16x32xf32>
    %19 = arith.maximumf %17, %18 : vector<16x32xf32>
    %20 = vector.shape_cast %19 : vector<16x32xf32> to vector<2x8x32xf32>
    %cst_13 = arith.constant dense<0.000000e+00> : vector<2x8xf32>
    %21 = vector.multi_reduction <add>, %20, %cst_13 [2] : vector<2x8x32xf32> to vector<2x8xf32>
    %22 = vector.shape_cast %21 : vector<2x8xf32> to vector<2x8x1xf32>
    %cst_14 = arith.constant dense<0.000000e+00> : vector<8x1xf32>
    %23 = vector.multi_reduction <add>, %22, %cst_14 [0] : vector<2x8x1xf32> to vector<8x1xf32>
    %24 = vector.shape_cast %23 : vector<8x1xf32> to vector<1x8x1xf32>
    %cst_15 = arith.constant 1.562500e-02 : f32
    %25 = vector.broadcast %cst_15 : f32 to vector<1x8x1xf32>
    %26 = arith.mulf %24, %25 : vector<1x8x1xf32>
    %27 = vector.broadcast %26 : vector<1x8x1xf32> to vector<2x8x32xf32>
    %28 = arith.subf %20, %27 : vector<2x8x32xf32>
    %29 = arith.mulf %28, %28 : vector<2x8x32xf32>
    %cst_16 = arith.constant dense<0.000000e+00> : vector<2x8xf32>
    %30 = vector.multi_reduction <add>, %29, %cst_16 [2] : vector<2x8x32xf32> to vector<2x8xf32>
    %31 = vector.shape_cast %30 : vector<2x8xf32> to vector<2x8x1xf32>
    %cst_17 = arith.constant dense<0.000000e+00> : vector<8x1xf32>
    %32 = vector.multi_reduction <add>, %31, %cst_17 [0] : vector<2x8x1xf32> to vector<8x1xf32>
    %33 = vector.shape_cast %32 : vector<8x1xf32> to vector<1x8x1xf32>
    %cst_18 = arith.constant 1.562500e-02 : f32
    %34 = vector.broadcast %cst_18 : f32 to vector<1x8x1xf32>
    %35 = arith.mulf %33, %34 : vector<1x8x1xf32>
    %cst_19 = arith.constant 9.99999974E-6 : f32
    %36 = vector.broadcast %cst_19 : f32 to vector<1x8x1xf32>
    %37 = arith.addf %35, %36 : vector<1x8x1xf32>
    %38 = math.rsqrt %37 : vector<1x8x1xf32>
    %39 = vector.broadcast %38 : vector<1x8x1xf32> to vector<2x8x32xf32>
    %40 = arith.mulf %28, %39 : vector<2x8x32xf32>
    %c0_20 = arith.constant 0 : index
    %c0_21 = arith.constant 0 : index
    %41 = vector.load %arg4[%c0_20, %c0_21] : memref<32x32xf32, #tpu.memory_space<vmem>>, vector<32x32xf32>
    %c0_22 = arith.constant 0 : index
    %c0_23 = arith.constant 0 : index
    %42 = vector.load %arg5[%c0_22, %c0_23] : memref<1x32xf32, #tpu.memory_space<vmem>>, vector<1x32xf32>
    %cst_24 = arith.constant dense<0.000000e+00> : vector<2x8x32xf32>
    %43 = tpu.matmul %0, %40, %cst_24 {dimension_numbers = #tpu.dot_dimension_numbers<[2], [1], [1], [2], [0, 0, 0, 1, 1, 2], [0], [0]>} : vector<2x8x8xf32>, vector<2x8x32xf32>, vector<2x8x32xf32> -> vector<2x8x32xf32>
    %44 = arith.addf %43, %40 : vector<2x8x32xf32>
    %45 = vector.shape_cast %44 : vector<2x8x32xf32> to vector<16x32xf32>
    %cst_25 = arith.constant dense<0.000000e+00> : vector<16x32xf32>
    %46 = tpu.matmul %45, %41, %cst_25 {dimension_numbers = #tpu.dot_dimension_numbers<[1], [0], [0], [1], [0, 0, 1, 1], [], []>} : vector<16x32xf32>, vector<32x32xf32>, vector<16x32xf32> -> vector<16x32xf32>
    %47 = vector.broadcast %42 : vector<1x32xf32> to vector<16x32xf32>
    %48 = arith.addf %46, %47 : vector<16x32xf32>
    %49 = arith.mulf %48, %48 : vector<16x32xf32>
    %cst_26 = arith.constant dense<0.000000e+00> : vector<16xf32>
    %50 = vector.multi_reduction <add>, %49, %cst_26 [1] : vector<16x32xf32> to vector<16xf32>
    %51 = vector.shape_cast %50 : vector<16xf32> to vector<16x1xf32>
    %cst_27 = arith.constant 1.000000e-24 : f32
    %52 = vector.broadcast %cst_27 : f32 to vector<16x1xf32>
    %53 = arith.maximumf %51, %52 : vector<16x1xf32>
    %54 = math.rsqrt %53 : vector<16x1xf32>
    %55 = vector.broadcast %54 : vector<16x1xf32> to vector<16x32xf32>
    %56 = arith.mulf %48, %55 : vector<16x32xf32>
    %cst_28 = arith.constant 0.000000e+00 : f32
    %57 = vector.broadcast %cst_28 : f32 to vector<16x32xf32>
    %58 = arith.maximumf %56, %57 : vector<16x32xf32>
    %59 = vector.shape_cast %58 : vector<16x32xf32> to vector<2x8x32xf32>
    %cst_29 = arith.constant dense<0.000000e+00> : vector<2x8xf32>
    %60 = vector.multi_reduction <add>, %59, %cst_29 [2] : vector<2x8x32xf32> to vector<2x8xf32>
    %61 = vector.shape_cast %60 : vector<2x8xf32> to vector<2x8x1xf32>
    %cst_30 = arith.constant dense<0.000000e+00> : vector<8x1xf32>
    %62 = vector.multi_reduction <add>, %61, %cst_30 [0] : vector<2x8x1xf32> to vector<8x1xf32>
    %63 = vector.shape_cast %62 : vector<8x1xf32> to vector<1x8x1xf32>
    %cst_31 = arith.constant 1.562500e-02 : f32
    %64 = vector.broadcast %cst_31 : f32 to vector<1x8x1xf32>
    %65 = arith.mulf %63, %64 : vector<1x8x1xf32>
    %66 = vector.broadcast %65 : vector<1x8x1xf32> to vector<2x8x32xf32>
    %67 = arith.subf %59, %66 : vector<2x8x32xf32>
    %68 = arith.mulf %67, %67 : vector<2x8x32xf32>
    %cst_32 = arith.constant dense<0.000000e+00> : vector<2x8xf32>
    %69 = vector.multi_reduction <add>, %68, %cst_32 [2] : vector<2x8x32xf32> to vector<2x8xf32>
    %70 = vector.shape_cast %69 : vector<2x8xf32> to vector<2x8x1xf32>
    %cst_33 = arith.constant dense<0.000000e+00> : vector<8x1xf32>
    %71 = vector.multi_reduction <add>, %70, %cst_33 [0] : vector<2x8x1xf32> to vector<8x1xf32>
    %72 = vector.shape_cast %71 : vector<8x1xf32> to vector<1x8x1xf32>
    %cst_34 = arith.constant 1.562500e-02 : f32
    %73 = vector.broadcast %cst_34 : f32 to vector<1x8x1xf32>
    %74 = arith.mulf %72, %73 : vector<1x8x1xf32>
    %cst_35 = arith.constant 9.99999974E-6 : f32
    %75 = vector.broadcast %cst_35 : f32 to vector<1x8x1xf32>
    %76 = arith.addf %74, %75 : vector<1x8x1xf32>
    %77 = math.rsqrt %76 : vector<1x8x1xf32>
    %78 = vector.broadcast %77 : vector<1x8x1xf32> to vector<2x8x32xf32>
    %79 = arith.mulf %67, %78 : vector<2x8x32xf32>
    %c0_36 = arith.constant 0 : index
    %c0_37 = arith.constant 0 : index
    %80 = vector.load %arg6[%c0_36, %c0_37] : memref<32x16xf32, #tpu.memory_space<vmem>>, vector<32x16xf32>
    %c0_38 = arith.constant 0 : index
    %c0_39 = arith.constant 0 : index
    %81 = vector.load %arg7[%c0_38, %c0_39] : memref<1x16xf32, #tpu.memory_space<vmem>>, vector<1x16xf32>
    %cst_40 = arith.constant dense<0.000000e+00> : vector<2x8x32xf32>
    %82 = tpu.matmul %0, %79, %cst_40 {dimension_numbers = #tpu.dot_dimension_numbers<[2], [1], [1], [2], [0, 0, 0, 1, 1, 2], [0], [0]>} : vector<2x8x8xf32>, vector<2x8x32xf32>, vector<2x8x32xf32> -> vector<2x8x32xf32>
    %83 = arith.addf %82, %79 : vector<2x8x32xf32>
    %84 = vector.shape_cast %83 : vector<2x8x32xf32> to vector<16x32xf32>
    %cst_41 = arith.constant dense<0.000000e+00> : vector<16x16xf32>
    %85 = tpu.matmul %84, %80, %cst_41 {dimension_numbers = #tpu.dot_dimension_numbers<[1], [0], [0], [1], [0, 0, 1, 1], [], []>} : vector<16x32xf32>, vector<32x16xf32>, vector<16x16xf32> -> vector<16x16xf32>
    %86 = vector.broadcast %81 : vector<1x16xf32> to vector<16x16xf32>
    %87 = arith.addf %85, %86 : vector<16x16xf32>
    %88 = arith.mulf %87, %87 : vector<16x16xf32>
    %cst_42 = arith.constant dense<0.000000e+00> : vector<16xf32>
    %89 = vector.multi_reduction <add>, %88, %cst_42 [1] : vector<16x16xf32> to vector<16xf32>
    %90 = vector.shape_cast %89 : vector<16xf32> to vector<16x1xf32>
    %cst_43 = arith.constant 1.000000e-24 : f32
    %91 = vector.broadcast %cst_43 : f32 to vector<16x1xf32>
    %92 = arith.maximumf %90, %91 : vector<16x1xf32>
    %93 = math.rsqrt %92 : vector<16x1xf32>
    %94 = vector.broadcast %93 : vector<16x1xf32> to vector<16x16xf32>
    %95 = arith.mulf %87, %94 : vector<16x16xf32>
    %96 = vector.shape_cast %95 : vector<16x16xf32> to vector<2x8x16xf32>
    %c0_44 = arith.constant 0 : index
    %c0_45 = arith.constant 0 : index
    %c0_46 = arith.constant 0 : index
    %97 = vector.load %arg14[%c0_44, %c0_45, %c0_46] : memref<2x8x16xf32, #tpu.memory_space<vmem>>, vector<2x8x16xf32>
    tpu.vector_store %arg14[%c0_44, %c0_45, %c0_46], %96 {strides = array<i32>} : memref<2x8x16xf32, #tpu.memory_space<vmem>>, vector<2x8x16xf32>,
    %cst_47 = arith.constant 0.000000e+00 : f32
    %98 = vector.broadcast %cst_47 : f32 to vector<2x16xf32>
    %cst_48 = arith.constant 0.000000e+00 : f32
    %99 = vector.broadcast %cst_48 : f32 to vector<2x10xf32>
    %c0_49 = arith.constant 0 : index
    %c0_50 = arith.constant 0 : index
    %c0_51 = arith.constant 0 : index
    %100 = vector.load %arg14[%c0_49, %c0_50, %c0_51] : memref<2x8x16xf32, #tpu.memory_space<vmem>>, vector<2x1x16xf32>
    %101 = vector.shape_cast %100 : vector<2x1x16xf32> to vector<2x16xf32>
    %102 = arith.addf %98, %101 : vector<2x16xf32>
    %c0_52 = arith.constant 0 : index
    %c0_53 = arith.constant 0 : index
    %c0_54 = arith.constant 0 : index
    %103 = vector.load %arg8[%c0_52, %c0_53, %c0_54] : memref<8x10x16xf32, #tpu.memory_space<vmem>>, vector<1x10x16xf32>
    %104 = vector.shape_cast %103 : vector<1x10x16xf32> to vector<10x16xf32>
    %cst_55 = arith.constant dense<0.000000e+00> : vector<2x10xf32>
    %105 = tpu.matmul %101, %104, %cst_55 {dimension_numbers = #tpu.dot_dimension_numbers<[1], [1], [0], [0], [0, 0, 1, 0], [], []>} : vector<2x16xf32>, vector<10x16xf32>, vector<2x10xf32> -> vector<2x10xf32>
    %106 = arith.addf %99, %105 : vector<2x10xf32>
    %c0_56 = arith.constant 0 : index
    %c1 = arith.constant 1 : index
    %c0_57 = arith.constant 0 : index
    %107 = vector.load %arg14[%c0_56, %c1, %c0_57] : memref<2x8x16xf32, #tpu.memory_space<vmem>>, vector<2x1x16xf32>
    %108 = vector.shape_cast %107 : vector<2x1x16xf32> to vector<2x16xf32>
    %109 = arith.addf %102, %108 : vector<2x16xf32>
    %c1_58 = arith.constant 1 : index
    %c0_59 = arith.constant 0 : index
    %c0_60 = arith.constant 0 : index
    %110 = vector.load %arg8[%c1_58, %c0_59, %c0_60] : memref<8x10x16xf32, #tpu.memory_space<vmem>>, vector<1x10x16xf32>
    %111 = vector.shape_cast %110 : vector<1x10x16xf32> to vector<10x16xf32>
    %cst_61 = arith.constant dense<0.000000e+00> : vector<2x10xf32>
    %112 = tpu.matmul %108, %111, %cst_61 {dimension_numbers = #tpu.dot_dimension_numbers<[1], [1], [0], [0], [0, 0, 1, 0], [], []>} : vector<2x16xf32>, vector<10x16xf32>, vector<2x10xf32> -> vector<2x10xf32>
    %113 = arith.addf %106, %112 : vector<2x10xf32>
    %c0_62 = arith.constant 0 : index
    %c2 = arith.constant 2 : index
    %c0_63 = arith.constant 0 : index
    %114 = vector.load %arg14[%c0_62, %c2, %c0_63] : memref<2x8x16xf32, #tpu.memory_space<vmem>>, vector<2x1x16xf32>
    %115 = vector.shape_cast %114 : vector<2x1x16xf32> to vector<2x16xf32>
    %116 = arith.addf %109, %115 : vector<2x16xf32>
    %c2_64 = arith.constant 2 : index
    %c0_65 = arith.constant 0 : index
    %c0_66 = arith.constant 0 : index
    %117 = vector.load %arg8[%c2_64, %c0_65, %c0_66] : memref<8x10x16xf32, #tpu.memory_space<vmem>>, vector<1x10x16xf32>
    %118 = vector.shape_cast %117 : vector<1x10x16xf32> to vector<10x16xf32>
    %cst_67 = arith.constant dense<0.000000e+00> : vector<2x10xf32>
    %119 = tpu.matmul %115, %118, %cst_67 {dimension_numbers = #tpu.dot_dimension_numbers<[1], [1], [0], [0], [0, 0, 1, 0], [], []>} : vector<2x16xf32>, vector<10x16xf32>, vector<2x10xf32> -> vector<2x10xf32>
    %120 = arith.addf %113, %119 : vector<2x10xf32>
    %c0_68 = arith.constant 0 : index
    %c3 = arith.constant 3 : index
    %c0_69 = arith.constant 0 : index
    %121 = vector.load %arg14[%c0_68, %c3, %c0_69] : memref<2x8x16xf32, #tpu.memory_space<vmem>>, vector<2x1x16xf32>
    %122 = vector.shape_cast %121 : vector<2x1x16xf32> to vector<2x16xf32>
    %123 = arith.addf %116, %122 : vector<2x16xf32>
    %c3_70 = arith.constant 3 : index
    %c0_71 = arith.constant 0 : index
    %c0_72 = arith.constant 0 : index
    %124 = vector.load %arg8[%c3_70, %c0_71, %c0_72] : memref<8x10x16xf32, #tpu.memory_space<vmem>>, vector<1x10x16xf32>
    %125 = vector.shape_cast %124 : vector<1x10x16xf32> to vector<10x16xf32>
    %cst_73 = arith.constant dense<0.000000e+00> : vector<2x10xf32>
    %126 = tpu.matmul %122, %125, %cst_73 {dimension_numbers = #tpu.dot_dimension_numbers<[1], [1], [0], [0], [0, 0, 1, 0], [], []>} : vector<2x16xf32>, vector<10x16xf32>, vector<2x10xf32> -> vector<2x10xf32>
    %127 = arith.addf %120, %126 : vector<2x10xf32>
    %c0_74 = arith.constant 0 : index
    %c4 = arith.constant 4 : index
    %c0_75 = arith.constant 0 : index
    %128 = vector.load %arg14[%c0_74, %c4, %c0_75] : memref<2x8x16xf32, #tpu.memory_space<vmem>>, vector<2x1x16xf32>
    %129 = vector.shape_cast %128 : vector<2x1x16xf32> to vector<2x16xf32>
    %130 = arith.addf %123, %129 : vector<2x16xf32>
    %c4_76 = arith.constant 4 : index
    %c0_77 = arith.constant 0 : index
    %c0_78 = arith.constant 0 : index
    %131 = vector.load %arg8[%c4_76, %c0_77, %c0_78] : memref<8x10x16xf32, #tpu.memory_space<vmem>>, vector<1x10x16xf32>
    %132 = vector.shape_cast %131 : vector<1x10x16xf32> to vector<10x16xf32>
    %cst_79 = arith.constant dense<0.000000e+00> : vector<2x10xf32>
    %133 = tpu.matmul %129, %132, %cst_79 {dimension_numbers = #tpu.dot_dimension_numbers<[1], [1], [0], [0], [0, 0, 1, 0], [], []>} : vector<2x16xf32>, vector<10x16xf32>, vector<2x10xf32> -> vector<2x10xf32>
    %134 = arith.addf %127, %133 : vector<2x10xf32>
    %c0_80 = arith.constant 0 : index
    %c5 = arith.constant 5 : index
    %c0_81 = arith.constant 0 : index
    %135 = vector.load %arg14[%c0_80, %c5, %c0_81] : memref<2x8x16xf32, #tpu.memory_space<vmem>>, vector<2x1x16xf32>
    %136 = vector.shape_cast %135 : vector<2x1x16xf32> to vector<2x16xf32>
    %137 = arith.addf %130, %136 : vector<2x16xf32>
    %c5_82 = arith.constant 5 : index
    %c0_83 = arith.constant 0 : index
    %c0_84 = arith.constant 0 : index
    %138 = vector.load %arg8[%c5_82, %c0_83, %c0_84] : memref<8x10x16xf32, #tpu.memory_space<vmem>>, vector<1x10x16xf32>
    %139 = vector.shape_cast %138 : vector<1x10x16xf32> to vector<10x16xf32>
    %cst_85 = arith.constant dense<0.000000e+00> : vector<2x10xf32>
    %140 = tpu.matmul %136, %139, %cst_85 {dimension_numbers = #tpu.dot_dimension_numbers<[1], [1], [0], [0], [0, 0, 1, 0], [], []>} : vector<2x16xf32>, vector<10x16xf32>, vector<2x10xf32> -> vector<2x10xf32>
    %141 = arith.addf %134, %140 : vector<2x10xf32>
    %c0_86 = arith.constant 0 : index
    %c6 = arith.constant 6 : index
    %c0_87 = arith.constant 0 : index
    %142 = vector.load %arg14[%c0_86, %c6, %c0_87] : memref<2x8x16xf32, #tpu.memory_space<vmem>>, vector<2x1x16xf32>
    %143 = vector.shape_cast %142 : vector<2x1x16xf32> to vector<2x16xf32>
    %144 = arith.addf %137, %143 : vector<2x16xf32>
    %c6_88 = arith.constant 6 : index
    %c0_89 = arith.constant 0 : index
    %c0_90 = arith.constant 0 : index
    %145 = vector.load %arg8[%c6_88, %c0_89, %c0_90] : memref<8x10x16xf32, #tpu.memory_space<vmem>>, vector<1x10x16xf32>
    %146 = vector.shape_cast %145 : vector<1x10x16xf32> to vector<10x16xf32>
    %cst_91 = arith.constant dense<0.000000e+00> : vector<2x10xf32>
    %147 = tpu.matmul %143, %146, %cst_91 {dimension_numbers = #tpu.dot_dimension_numbers<[1], [1], [0], [0], [0, 0, 1, 0], [], []>} : vector<2x16xf32>, vector<10x16xf32>, vector<2x10xf32> -> vector<2x10xf32>
    %148 = arith.addf %141, %147 : vector<2x10xf32>
    %c0_92 = arith.constant 0 : index
    %c7 = arith.constant 7 : index
    %c0_93 = arith.constant 0 : index
    %149 = vector.load %arg14[%c0_92, %c7, %c0_93] : memref<2x8x16xf32, #tpu.memory_space<vmem>>, vector<2x1x16xf32>
    %150 = vector.shape_cast %149 : vector<2x1x16xf32> to vector<2x16xf32>
    %151 = arith.addf %144, %150 : vector<2x16xf32>
    %c7_94 = arith.constant 7 : index
    %c0_95 = arith.constant 0 : index
    %c0_96 = arith.constant 0 : index
    %152 = vector.load %arg8[%c7_94, %c0_95, %c0_96] : memref<8x10x16xf32, #tpu.memory_space<vmem>>, vector<1x10x16xf32>
    %153 = vector.shape_cast %152 : vector<1x10x16xf32> to vector<10x16xf32>
    %cst_97 = arith.constant dense<0.000000e+00> : vector<2x10xf32>
    %154 = tpu.matmul %150, %153, %cst_97 {dimension_numbers = #tpu.dot_dimension_numbers<[1], [1], [0], [0], [0, 0, 1, 0], [], []>} : vector<2x16xf32>, vector<10x16xf32>, vector<2x10xf32> -> vector<2x10xf32>
    %155 = arith.addf %148, %154 : vector<2x10xf32>
    %cst_98 = arith.constant 1.250000e-01 : f32
    %156 = vector.broadcast %cst_98 : f32 to vector<2x16xf32>
    %157 = arith.mulf %151, %156 : vector<2x16xf32>
    %cst_99 = arith.constant dense<0xFF800000> : vector<2xf32>
    %158 = vector.multi_reduction <maximumf>, %155, %cst_99 [1] : vector<2x10xf32> to vector<2xf32>
    %159 = vector.shape_cast %158 : vector<2xf32> to vector<2x1xf32>
    %160 = vector.broadcast %159 : vector<2x1xf32> to vector<2x10xf32>
    %161 = arith.subf %155, %160 : vector<2x10xf32>
    %162 = math.exp %161 : vector<2x10xf32>
    %cst_100 = arith.constant dense<0.000000e+00> : vector<2xf32>
    %163 = vector.multi_reduction <add>, %162, %cst_100 [1] : vector<2x10xf32> to vector<2xf32>
    %164 = vector.shape_cast %163 : vector<2xf32> to vector<2x1xf32>
    %165 = vector.broadcast %164 : vector<2x1xf32> to vector<2x10xf32>
    %166 = arith.divf %162, %165 : vector<2x10xf32>
    %cst_101 = arith.constant 2.000000e-02 : f32
    %167 = vector.broadcast %cst_101 : f32 to vector<2x10xf32>
    %168 = arith.subf %166, %167 : vector<2x10xf32>
    %cst_102 = arith.constant 0.000000e+00 : f32
    %169 = vector.broadcast %cst_102 : f32 to vector<2x10xf32>
    %170 = arith.maximumf %168, %169 : vector<2x10xf32>
    %171 = arith.mulf %170, %166 : vector<2x10xf32>
    %cst_103 = arith.constant 2.000000e-02 : f32
    %172 = vector.broadcast %cst_103 : f32 to vector<2x10xf32>
    %173 = arith.subf %166, %172 : vector<2x10xf32>
    %174 = math.absf %173 : vector<2x10xf32>
    %cst_104 = arith.constant 9.99999996E-13 : f32
    %175 = vector.broadcast %cst_104 : f32 to vector<2x10xf32>
    %176 = arith.addf %174, %175 : vector<2x10xf32>
    %177 = arith.divf %171, %176 : vector<2x10xf32>
    %178 = math.absf %177 : vector<2x10xf32>
    %cst_105 = arith.constant dense<0.000000e+00> : vector<2xf32>
    %179 = vector.multi_reduction <add>, %178, %cst_105 [1] : vector<2x10xf32> to vector<2xf32>
    %180 = vector.shape_cast %179 : vector<2xf32> to vector<2x1xf32>
    %cst_106 = arith.constant 9.99999996E-13 : f32
    %181 = vector.broadcast %cst_106 : f32 to vector<2x1xf32>
    %182 = arith.maximumf %180, %181 : vector<2x1xf32>
    %183 = vector.broadcast %182 : vector<2x1xf32> to vector<2x10xf32>
    %184 = arith.divf %177, %183 : vector<2x10xf32>
    %c0_107 = arith.constant 0 : index
    %c0_108 = arith.constant 0 : index
    %185 = vector.load %arg9[%c0_107, %c0_108] : memref<6x16xf32, #tpu.memory_space<vmem>>, vector<6x16xf32>
    %cst_109 = arith.constant dense<0.000000e+00> : vector<2x6xf32>
    %186 = tpu.matmul %157, %185, %cst_109 {dimension_numbers = #tpu.dot_dimension_numbers<[1], [1], [0], [0], [0, 0, 1, 0], [], []>} : vector<2x16xf32>, vector<6x16xf32>, vector<2x6xf32> -> vector<2x6xf32>
    %cst_110 = arith.constant dense<0xFF800000> : vector<2xf32>
    %187 = vector.multi_reduction <maximumf>, %186, %cst_110 [1] : vector<2x6xf32> to vector<2xf32>
    %188 = vector.shape_cast %187 : vector<2xf32> to vector<2x1xf32>
    %189 = vector.broadcast %188 : vector<2x1xf32> to vector<2x6xf32>
    %190 = arith.subf %186, %189 : vector<2x6xf32>
    %191 = math.exp %190 : vector<2x6xf32>
    %cst_111 = arith.constant dense<0.000000e+00> : vector<2xf32>
    %192 = vector.multi_reduction <add>, %191, %cst_111 [1] : vector<2x6xf32> to vector<2xf32>
    %193 = vector.shape_cast %192 : vector<2xf32> to vector<2x1xf32>
    %194 = vector.broadcast %193 : vector<2x1xf32> to vector<2x6xf32>
    %195 = arith.divf %191, %194 : vector<2x6xf32>
    %cst_112 = arith.constant 0.0333333351 : f32
    %196 = vector.broadcast %cst_112 : f32 to vector<2x6xf32>
    %197 = arith.subf %195, %196 : vector<2x6xf32>
    %cst_113 = arith.constant 0.000000e+00 : f32
    %198 = vector.broadcast %cst_113 : f32 to vector<2x6xf32>
    %199 = arith.maximumf %197, %198 : vector<2x6xf32>
    %200 = arith.mulf %199, %195 : vector<2x6xf32>
    %cst_114 = arith.constant 0.0333333351 : f32
    %201 = vector.broadcast %cst_114 : f32 to vector<2x6xf32>
    %202 = arith.subf %195, %201 : vector<2x6xf32>
    %203 = math.absf %202 : vector<2x6xf32>
    %cst_115 = arith.constant 9.99999996E-13 : f32
    %204 = vector.broadcast %cst_115 : f32 to vector<2x6xf32>
    %205 = arith.addf %203, %204 : vector<2x6xf32>
    %206 = arith.divf %200, %205 : vector<2x6xf32>
    %207 = math.absf %206 : vector<2x6xf32>
    %cst_116 = arith.constant dense<0.000000e+00> : vector<2xf32>
    %208 = vector.multi_reduction <add>, %207, %cst_116 [1] : vector<2x6xf32> to vector<2xf32>
    %209 = vector.shape_cast %208 : vector<2xf32> to vector<2x1xf32>
    %cst_117 = arith.constant 9.99999996E-13 : f32
    %210 = vector.broadcast %cst_117 : f32 to vector<2x1xf32>
    %211 = arith.maximumf %209, %210 : vector<2x1xf32>
    %212 = vector.broadcast %211 : vector<2x1xf32> to vector<2x6xf32>
    %213 = arith.divf %206, %212 : vector<2x6xf32>
    %c0_118 = arith.constant 0 : index
    %c0_119 = arith.constant 0 : index
    %214 = vector.load %arg9[%c0_118, %c0_119] : memref<6x16xf32, #tpu.memory_space<vmem>>, vector<6x16xf32>
    %cst_120 = arith.constant dense<0.000000e+00> : vector<2x16xf32>
    %215 = tpu.matmul %213, %214, %cst_120 {dimension_numbers = #tpu.dot_dimension_numbers<[1], [0], [0], [1], [0, 0, 1, 1], [], []>} : vector<2x6xf32>, vector<6x16xf32>, vector<2x16xf32> -> vector<2x16xf32>
    %c0_121 = arith.constant 0 : index
    %c0_122 = arith.constant 0 : index
    %c0_123 = arith.constant 0 : index
    %216 = vector.load %arg8[%c0_121, %c0_122, %c0_123] : memref<8x10x16xf32, #tpu.memory_space<vmem>>, vector<1x10x16xf32>
    %217 = vector.shape_cast %216 : vector<1x10x16xf32> to vector<10x16xf32>
    %cst_124 = arith.constant dense<0.000000e+00> : vector<2x16xf32>
    %218 = tpu.matmul %184, %217, %cst_124 {dimension_numbers = #tpu.dot_dimension_numbers<[1], [0], [0], [1], [0, 0, 1, 1], [], []>} : vector<2x10xf32>, vector<10x16xf32>, vector<2x16xf32> -> vector<2x16xf32>
    %c0_125 = arith.constant 0 : index
    %c0_126 = arith.constant 0 : index
    %c0_127 = arith.constant 0 : index
    %219 = vector.load %arg15[%c0_125, %c0_126, %c0_127] : memref<2x8x16xf32, #tpu.memory_space<vmem>>, vector<2x1x16xf32>
    %220 = vector.shape_cast %219 : vector<2x1x16xf32> to vector<2x16xf32>
    %221 = vector.shape_cast %218 : vector<2x16xf32> to vector<2x1x16xf32>
    tpu.vector_store %arg15[%c0_125, %c0_126, %c0_127], %221 {strides = array<i32>} : memref<2x8x16xf32, #tpu.memory_space<vmem>>, vector<2x1x16xf32>,
    %c1_128 = arith.constant 1 : index
    %c0_129 = arith.constant 0 : index
    %c0_130 = arith.constant 0 : index
    %222 = vector.load %arg8[%c1_128, %c0_129, %c0_130] : memref<8x10x16xf32, #tpu.memory_space<vmem>>, vector<1x10x16xf32>
    %223 = vector.shape_cast %222 : vector<1x10x16xf32> to vector<10x16xf32>
    %cst_131 = arith.constant dense<0.000000e+00> : vector<2x16xf32>
    %224 = tpu.matmul %184, %223, %cst_131 {dimension_numbers = #tpu.dot_dimension_numbers<[1], [0], [0], [1], [0, 0, 1, 1], [], []>} : vector<2x10xf32>, vector<10x16xf32>, vector<2x16xf32> -> vector<2x16xf32>
    %c0_132 = arith.constant 0 : index
    %c1_133 = arith.constant 1 : index
    %c0_134 = arith.constant 0 : index
    %225 = vector.load %arg15[%c0_132, %c1_133, %c0_134] : memref<2x8x16xf32, #tpu.memory_space<vmem>>, vector<2x1x16xf32>
    %226 = vector.shape_cast %225 : vector<2x1x16xf32> to vector<2x16xf32>
    %227 = vector.shape_cast %224 : vector<2x16xf32> to vector<2x1x16xf32>
    tpu.vector_store %arg15[%c0_132, %c1_133, %c0_134], %227 {strides = array<i32>} : memref<2x8x16xf32, #tpu.memory_space<vmem>>, vector<2x1x16xf32>,
    %c2_135 = arith.constant 2 : index
    %c0_136 = arith.constant 0 : index
    %c0_137 = arith.constant 0 : index
    %228 = vector.load %arg8[%c2_135, %c0_136, %c0_137] : memref<8x10x16xf32, #tpu.memory_space<vmem>>, vector<1x10x16xf32>
    %229 = vector.shape_cast %228 : vector<1x10x16xf32> to vector<10x16xf32>
    %cst_138 = arith.constant dense<0.000000e+00> : vector<2x16xf32>
    %230 = tpu.matmul %184, %229, %cst_138 {dimension_numbers = #tpu.dot_dimension_numbers<[1], [0], [0], [1], [0, 0, 1, 1], [], []>} : vector<2x10xf32>, vector<10x16xf32>, vector<2x16xf32> -> vector<2x16xf32>
    %c0_139 = arith.constant 0 : index
    %c2_140 = arith.constant 2 : index
    %c0_141 = arith.constant 0 : index
    %231 = vector.load %arg15[%c0_139, %c2_140, %c0_141] : memref<2x8x16xf32, #tpu.memory_space<vmem>>, vector<2x1x16xf32>
    %232 = vector.shape_cast %231 : vector<2x1x16xf32> to vector<2x16xf32>
    %233 = vector.shape_cast %230 : vector<2x16xf32> to vector<2x1x16xf32>
    tpu.vector_store %arg15[%c0_139, %c2_140, %c0_141], %233 {strides = array<i32>} : memref<2x8x16xf32, #tpu.memory_space<vmem>>, vector<2x1x16xf32>,
    %c3_142 = arith.constant 3 : index
    %c0_143 = arith.constant 0 : index
    %c0_144 = arith.constant 0 : index
    %234 = vector.load %arg8[%c3_142, %c0_143, %c0_144] : memref<8x10x16xf32, #tpu.memory_space<vmem>>, vector<1x10x16xf32>
    %235 = vector.shape_cast %234 : vector<1x10x16xf32> to vector<10x16xf32>
    %cst_145 = arith.constant dense<0.000000e+00> : vector<2x16xf32>
    %236 = tpu.matmul %184, %235, %cst_145 {dimension_numbers = #tpu.dot_dimension_numbers<[1], [0], [0], [1], [0, 0, 1, 1], [], []>} : vector<2x10xf32>, vector<10x16xf32>, vector<2x16xf32> -> vector<2x16xf32>
    %c0_146 = arith.constant 0 : index
    %c3_147 = arith.constant 3 : index
    %c0_148 = arith.constant 0 : index
    %237 = vector.load %arg15[%c0_146, %c3_147, %c0_148] : memref<2x8x16xf32, #tpu.memory_space<vmem>>, vector<2x1x16xf32>
    %238 = vector.shape_cast %237 : vector<2x1x16xf32> to vector<2x16xf32>
    %239 = vector.shape_cast %236 : vector<2x16xf32> to vector<2x1x16xf32>
    tpu.vector_store %arg15[%c0_146, %c3_147, %c0_148], %239 {strides = array<i32>} : memref<2x8x16xf32, #tpu.memory_space<vmem>>, vector<2x1x16xf32>,
    %c4_149 = arith.constant 4 : index
    %c0_150 = arith.constant 0 : index
    %c0_151 = arith.constant 0 : index
    %240 = vector.load %arg8[%c4_149, %c0_150, %c0_151] : memref<8x10x16xf32, #tpu.memory_space<vmem>>, vector<1x10x16xf32>
    %241 = vector.shape_cast %240 : vector<1x10x16xf32> to vector<10x16xf32>
    %cst_152 = arith.constant dense<0.000000e+00> : vector<2x16xf32>
    %242 = tpu.matmul %184, %241, %cst_152 {dimension_numbers = #tpu.dot_dimension_numbers<[1], [0], [0], [1], [0, 0, 1, 1], [], []>} : vector<2x10xf32>, vector<10x16xf32>, vector<2x16xf32> -> vector<2x16xf32>
    %c0_153 = arith.constant 0 : index
    %c4_154 = arith.constant 4 : index
    %c0_155 = arith.constant 0 : index
    %243 = vector.load %arg15[%c0_153, %c4_154, %c0_155] : memref<2x8x16xf32, #tpu.memory_space<vmem>>, vector<2x1x16xf32>
    %244 = vector.shape_cast %243 : vector<2x1x16xf32> to vector<2x16xf32>
    %245 = vector.shape_cast %242 : vector<2x16xf32> to vector<2x1x16xf32>
    tpu.vector_store %arg15[%c0_153, %c4_154, %c0_155], %245 {strides = array<i32>} : memref<2x8x16xf32, #tpu.memory_space<vmem>>, vector<2x1x16xf32>,
    %c5_156 = arith.constant 5 : index
    %c0_157 = arith.constant 0 : index
    %c0_158 = arith.constant 0 : index
    %246 = vector.load %arg8[%c5_156, %c0_157, %c0_158] : memref<8x10x16xf32, #tpu.memory_space<vmem>>, vector<1x10x16xf32>
    %247 = vector.shape_cast %246 : vector<1x10x16xf32> to vector<10x16xf32>
    %cst_159 = arith.constant dense<0.000000e+00> : vector<2x16xf32>
    %248 = tpu.matmul %184, %247, %cst_159 {dimension_numbers = #tpu.dot_dimension_numbers<[1], [0], [0], [1], [0, 0, 1, 1], [], []>} : vector<2x10xf32>, vector<10x16xf32>, vector<2x16xf32> -> vector<2x16xf32>
    %c0_160 = arith.constant 0 : index
    %c5_161 = arith.constant 5 : index
    %c0_162 = arith.constant 0 : index
    %249 = vector.load %arg15[%c0_160, %c5_161, %c0_162] : memref<2x8x16xf32, #tpu.memory_space<vmem>>, vector<2x1x16xf32>
    %250 = vector.shape_cast %249 : vector<2x1x16xf32> to vector<2x16xf32>
    %251 = vector.shape_cast %248 : vector<2x16xf32> to vector<2x1x16xf32>
    tpu.vector_store %arg15[%c0_160, %c5_161, %c0_162], %251 {strides = array<i32>} : memref<2x8x16xf32, #tpu.memory_space<vmem>>, vector<2x1x16xf32>,
    %c6_163 = arith.constant 6 : index
    %c0_164 = arith.constant 0 : index
    %c0_165 = arith.constant 0 : index
    %252 = vector.load %arg8[%c6_163, %c0_164, %c0_165] : memref<8x10x16xf32, #tpu.memory_space<vmem>>, vector<1x10x16xf32>
    %253 = vector.shape_cast %252 : vector<1x10x16xf32> to vector<10x16xf32>
    %cst_166 = arith.constant dense<0.000000e+00> : vector<2x16xf32>
    %254 = tpu.matmul %184, %253, %cst_166 {dimension_numbers = #tpu.dot_dimension_numbers<[1], [0], [0], [1], [0, 0, 1, 1], [], []>} : vector<2x10xf32>, vector<10x16xf32>, vector<2x16xf32> -> vector<2x16xf32>
    %c0_167 = arith.constant 0 : index
    %c6_168 = arith.constant 6 : index
    %c0_169 = arith.constant 0 : index
    %255 = vector.load %arg15[%c0_167, %c6_168, %c0_169] : memref<2x8x16xf32, #tpu.memory_space<vmem>>, vector<2x1x16xf32>
    %256 = vector.shape_cast %255 : vector<2x1x16xf32> to vector<2x16xf32>
    %257 = vector.shape_cast %254 : vector<2x16xf32> to vector<2x1x16xf32>
    tpu.vector_store %arg15[%c0_167, %c6_168, %c0_169], %257 {strides = array<i32>} : memref<2x8x16xf32, #tpu.memory_space<vmem>>, vector<2x1x16xf32>,
    %c7_170 = arith.constant 7 : index
    %c0_171 = arith.constant 0 : index
    %c0_172 = arith.constant 0 : index
    %258 = vector.load %arg8[%c7_170, %c0_171, %c0_172] : memref<8x10x16xf32, #tpu.memory_space<vmem>>, vector<1x10x16xf32>
    %259 = vector.shape_cast %258 : vector<1x10x16xf32> to vector<10x16xf32>
    %cst_173 = arith.constant dense<0.000000e+00> : vector<2x16xf32>
    %260 = tpu.matmul %184, %259, %cst_173 {dimension_numbers = #tpu.dot_dimension_numbers<[1], [0], [0], [1], [0, 0, 1, 1], [], []>} : vector<2x10xf32>, vector<10x16xf32>, vector<2x16xf32> -> vector<2x16xf32>
    %c0_174 = arith.constant 0 : index
    %c7_175 = arith.constant 7 : index
    %c0_176 = arith.constant 0 : index
    %261 = vector.load %arg15[%c0_174, %c7_175, %c0_176] : memref<2x8x16xf32, #tpu.memory_space<vmem>>, vector<2x1x16xf32>
    %262 = vector.shape_cast %261 : vector<2x1x16xf32> to vector<2x16xf32>
    %263 = vector.shape_cast %260 : vector<2x16xf32> to vector<2x1x16xf32>
    tpu.vector_store %arg15[%c0_174, %c7_175, %c0_176], %263 {strides = array<i32>} : memref<2x8x16xf32, #tpu.memory_space<vmem>>, vector<2x1x16xf32>,
    %c0_177 = arith.constant 0 : index
    %c0_178 = arith.constant 0 : index
    %c0_179 = arith.constant 0 : index
    %264 = vector.load %arg15[%c0_177, %c0_178, %c0_179] : memref<2x8x16xf32, #tpu.memory_space<vmem>>, vector<2x8x16xf32>
    %cst_180 = arith.constant dense<0.000000e+00> : vector<2x8x16xf32>
    %265 = tpu.matmul %0, %264, %cst_180 {dimension_numbers = #tpu.dot_dimension_numbers<[2], [1], [1], [2], [0, 0, 0, 1, 1, 2], [0], [0]>} : vector<2x8x8xf32>, vector<2x8x16xf32>, vector<2x8x16xf32> -> vector<2x8x16xf32>
    %266 = vector.shape_cast %265 : vector<2x8x16xf32> to vector<16x16xf32>
    %c0_181 = arith.constant 0 : index
    %c0_182 = arith.constant 0 : index
    %267 = vector.load %arg10[%c0_181, %c0_182] : memref<16x32xf32, #tpu.memory_space<vmem>>, vector<16x32xf32>
    %cst_183 = arith.constant dense<0.000000e+00> : vector<16x32xf32>
    %268 = tpu.matmul %266, %267, %cst_183 {dimension_numbers = #tpu.dot_dimension_numbers<[1], [0], [0], [1], [0, 0, 1, 1], [], []>} : vector<16x16xf32>, vector<16x32xf32>, vector<16x32xf32> -> vector<16x32xf32>
    %cst_184 = arith.constant 0.000000e+00 : f32
    %269 = vector.broadcast %cst_184 : f32 to vector<16x32xf32>
    %270 = arith.cmpf oge, %268, %269 : vector<16x32xf32>
    %cst_185 = arith.constant 0.00999999977 : f32
    %271 = vector.broadcast %cst_185 : f32 to vector<16x32xf32>
    %272 = arith.mulf %271, %268 : vector<16x32xf32>
    %273 = arith.select %270, %268, %272 : vector<16x32xi1>, vector<16x32xf32>
    %274 = vector.shape_cast %273 : vector<16x32xf32> to vector<2x8x32xf32>
    %cst_186 = arith.constant dense<0.000000e+00> : vector<2x8x32xf32>
    %275 = tpu.matmul %0, %274, %cst_186 {dimension_numbers = #tpu.dot_dimension_numbers<[2], [1], [1], [2], [0, 0, 0, 1, 1, 2], [0], [0]>} : vector<2x8x8xf32>, vector<2x8x32xf32>, vector<2x8x32xf32> -> vector<2x8x32xf32>
    %276 = vector.shape_cast %275 : vector<2x8x32xf32> to vector<16x32xf32>
    %c0_187 = arith.constant 0 : index
    %c0_188 = arith.constant 0 : index
    %277 = vector.load %arg11[%c0_187, %c0_188] : memref<32x16xf32, #tpu.memory_space<vmem>>, vector<32x16xf32>
    %cst_189 = arith.constant dense<0.000000e+00> : vector<16x16xf32>
    %278 = tpu.matmul %276, %277, %cst_189 {dimension_numbers = #tpu.dot_dimension_numbers<[1], [0], [0], [1], [0, 0, 1, 1], [], []>} : vector<16x32xf32>, vector<32x16xf32>, vector<16x16xf32> -> vector<16x16xf32>
    %cst_190 = arith.constant dense<0.000000e+00> : vector<2x8x8xf32>
    %279 = tpu.matmul %264, %264, %cst_190 {dimension_numbers = #tpu.dot_dimension_numbers<[2], [2], [1], [1], [0, 0, 0, 1, 1, 1], [0], [0]>} : vector<2x8x16xf32>, vector<2x8x16xf32>, vector<2x8x8xf32> -> vector<2x8x8xf32>
    %cst_191 = arith.constant 0.000000e+00 : f32
    %280 = vector.broadcast %cst_191 : f32 to vector<2x8x8xf32>
    %281 = arith.maximumf %279, %280 : vector<2x8x8xf32>
    %c0_192 = arith.constant 0 : index
    %c0_193 = arith.constant 0 : index
    %282 = vector.load %arg12[%c0_192, %c0_193] : memref<16x24xf32, #tpu.memory_space<vmem>>, vector<16x16xf32>
    tpu.vector_store %arg12[%c0_192, %c0_193], %278 {strides = array<i32>} : memref<16x24xf32, #tpu.memory_space<vmem>>, vector<16x16xf32>,
    %283 = vector.shape_cast %281 : vector<2x8x8xf32> to vector<16x8xf32>
    %c0_194 = arith.constant 0 : index
    %c16 = arith.constant 16 : index
    %284 = vector.load %arg12[%c0_194, %c16] : memref<16x24xf32, #tpu.memory_space<vmem>>, vector<16x8xf32>
    tpu.vector_store %arg12[%c0_194, %c16], %283 {strides = array<i32>} : memref<16x24xf32, #tpu.memory_space<vmem>>, vector<16x8xf32>,
    %c0_195 = arith.constant 0 : index
    %c0_196 = arith.constant 0 : index
    %285 = vector.load %arg13[%c0_195, %c0_196] : memref<2x48xf32, #tpu.memory_space<vmem>>, vector<2x10xf32>
    tpu.vector_store %arg13[%c0_195, %c0_196], %184 {strides = array<i32>} : memref<2x48xf32, #tpu.memory_space<vmem>>, vector<2x10xf32>,
    %c0_197 = arith.constant 0 : index
    %c10 = arith.constant 10 : index
    %286 = vector.load %arg13[%c0_197, %c10] : memref<2x48xf32, #tpu.memory_space<vmem>>, vector<2x6xf32>
    tpu.vector_store %arg13[%c0_197, %c10], %213 {strides = array<i32>} : memref<2x48xf32, #tpu.memory_space<vmem>>, vector<2x6xf32>,
    %c0_198 = arith.constant 0 : index
    %c16_199 = arith.constant 16 : index
    %287 = vector.load %arg13[%c0_198, %c16_199] : memref<2x48xf32, #tpu.memory_space<vmem>>, vector<2x16xf32>
    tpu.vector_store %arg13[%c0_198, %c16_199], %157 {strides = array<i32>} : memref<2x48xf32, #tpu.memory_space<vmem>>, vector<2x16xf32>,
    %c0_200 = arith.constant 0 : index
    %c32 = arith.constant 32 : index
    %288 = vector.load %arg13[%c0_200, %c32] : memref<2x48xf32, #tpu.memory_space<vmem>>, vector<2x16xf32>
    tpu.vector_store %arg13[%c0_200, %c32], %215 {strides = array<i32>} : memref<2x48xf32, #tpu.memory_space<vmem>>, vector<2x16xf32>,
    return
  }
}

</mosaic_0001>

<llo_original>
// kernel: gnnet_forward.1
$region0: #{gnnet_forward.1}
  #allocation0 [shape = 'u32[]', space=smem, size = 0x4, offset = 0x4, fixed_abs, tag = 'smem constant byte address 0x4 - core index']
  #allocation1 [shape = 'u32[72,128]{1,0:T(1,128)}', space=vmem, size = 0x9000, scoped, tag = 'internal scratch']
  #allocation2 [shape = 'f32[2,8,16]{2,1,0:T(8,128)}', space=vmem, size = 0x2000, scoped, tag = 'scratch operand']
  #allocation3 [shape = 'f32[2,8,16]{2,1,0:T(8,128)}', space=vmem, size = 0x2000, scoped, tag = 'scratch operand']
  %s0 = inlined_call_operand.vmem [shape: f32[2,8,16], index: 0, kind: input, shape index: {}]
  %s1 = inlined_call_operand.vmem [shape: f32[2,8,8], index: 1, kind: input, shape index: {}]
  %s2 = inlined_call_operand.vmem [shape: f32[16,32], index: 2, kind: input, shape index: {}]
  %s3 = inlined_call_operand.vmem [shape: f32[1,32], index: 3, kind: input, shape index: {}]
  %s4 = inlined_call_operand.vmem [shape: f32[32,32], index: 4, kind: input, shape index: {}]
  %s5 = inlined_call_operand.vmem [shape: f32[1,32], index: 5, kind: input, shape index: {}]
  %s6 = inlined_call_operand.vmem [shape: f32[32,16], index: 6, kind: input, shape index: {}]
  %s7 = inlined_call_operand.vmem [shape: f32[1,16], index: 7, kind: input, shape index: {}]
  %s8 = inlined_call_operand.vmem [shape: f32[8,10,16], index: 8, kind: input, shape index: {}]
  %s9 = inlined_call_operand.vmem [shape: f32[6,16], index: 9, kind: input, shape index: {}]
  %s10 = inlined_call_operand.vmem [shape: f32[16,32], index: 10, kind: input, shape index: {}]
  %s11 = inlined_call_operand.vmem [shape: f32[32,16], index: 11, kind: input, shape index: {}]
  %s12 = inlined_call_operand.vmem [shape: f32[16,24], index: 12, kind: output, shape index: {0}]
  %s13 = inlined_call_operand.vmem [shape: f32[2,48], index: 13, kind: output, shape index: {1}]
  %14 = xla_tuple %s12, %s13
  %s15 = sld [smem:[#allocation0]]
  $region66: #{gnnet_forward.1} parent=0
    _
  %s17 = ssub.s32 1, %s15
  %s18 = scalar_select 0, %s17, %s15
  // Predicated region
  $region2: #{gnnet_forward.1} parent=0 // pred_check
    _
  $region3: #{gnnet_forward.1} parent=0 // pred_check_branch
    %20 = sbr.rel (0) target = $region5
  $region4: #{gnnet_forward.1} parent=0 // pred_region
    _
  $region5: #{gnnet_forward.1} parent=0 // pred_fallthru
    _
  // Predicated region
  $region6: #{gnnet_forward.1} parent=0 // pred_check
    _
  $region7: #{gnnet_forward.1} parent=0 // pred_check_branch
    %22 = sbr.rel (0) target = $region9
  $region8: #{gnnet_forward.1} parent=0 // pred_region
    _
  $region9: #{gnnet_forward.1} parent=0 // pred_fallthru
    _
  // Predicated region
  $region10: #{gnnet_forward.1} parent=0 // pred_check
    _
  $region11: #{gnnet_forward.1} parent=0 // pred_check_branch
    %24 = sbr.rel (0) target = $region13
  $region12: #{gnnet_forward.1} parent=0 // pred_region
    _
  $region13: #{gnnet_forward.1} parent=0 // pred_fallthru
    _
  // Predicated region
  $region14: #{gnnet_forward.1} parent=0 // pred_check
    _
  $region15: #{gnnet_forward.1} parent=0 // pred_check_branch
    %26 = sbr.rel (0) target = $region17
  $region16: #{gnnet_forward.1} parent=0 // pred_region
    _
  $region17: #{gnnet_forward.1} parent=0 // pred_fallthru
    _
  // Predicated region
  $region18: #{gnnet_forward.1} parent=0 // pred_check
    _
  $region19: #{gnnet_forward.1} parent=0 // pred_check_branch
    %28 = sbr.rel (0) target = $region21
  $region20: #{gnnet_forward.1} parent=0 // pred_region
    _
  $region21: #{gnnet_forward.1} parent=0 // pred_fallthru
    _
  // Predicated region
  $region22: #{gnnet_forward.1} parent=0 // pred_check
    _
  $region23: #{gnnet_forward.1} parent=0 // pred_check_branch
    %30 = sbr.rel (0) target = $region25
  $region24: #{gnnet_forward.1} parent=0 // pred_region
    _
  $region25: #{gnnet_forward.1} parent=0 // pred_fallthru
    _
  // Predicated region
  $region26: #{gnnet_forward.1} parent=0 // pred_check
    _
  $region27: #{gnnet_forward.1} parent=0 // pred_check_branch
    %32 = sbr.rel (0) target = $region29
  $region28: #{gnnet_forward.1} parent=0 // pred_region
    _
  $region29: #{gnnet_forward.1} parent=0 // pred_fallthru
    _
  // Predicated region
  $region30: #{gnnet_forward.1} parent=0 // pred_check
    _
  $region31: #{gnnet_forward.1} parent=0 // pred_check_branch
    %34 = sbr.rel (0) target = $region33
  $region32: #{gnnet_forward.1} parent=0 // pred_region
    _
  $region33: #{gnnet_forward.1} parent=0 // pred_fallthru
    _
  // Predicated region
  $region34: #{gnnet_forward.1} parent=0 // pred_check
    _
  $region35: #{gnnet_forward.1} parent=0 // pred_check_branch
    %36 = sbr.rel (0) target = $region37
  $region36: #{gnnet_forward.1} parent=0 // pred_region
    _
  $region37: #{gnnet_forward.1} parent=0 // pred_fallthru
    _
  // Predicated region
  $region38: #{gnnet_forward.1} parent=0 // pred_check
    _
  $region39: #{gnnet_forward.1} parent=0 // pred_check_branch
    %38 = sbr.rel (0) target = $region41
  $region40: #{gnnet_forward.1} parent=0 // pred_region
    _
  $region41: #{gnnet_forward.1} parent=0 // pred_fallthru
    _
  // Predicated region
  $region42: #{gnnet_forward.1} parent=0 // pred_check
    _
  $region43: #{gnnet_forward.1} parent=0 // pred_check_branch
    %40 = sbr.rel (0) target = $region45
  $region44: #{gnnet_forward.1} parent=0 // pred_region
    _
  $region45: #{gnnet_forward.1} parent=0 // pred_fallthru
    _
  // Predicated region
  $region46: #{gnnet_forward.1} parent=0 // pred_check
    _
  $region47: #{gnnet_forward.1} parent=0 // pred_check_branch
    %42 = sbr.rel (0) target = $region49
  $region48: #{gnnet_forward.1} parent=0 // pred_region
    _
  $region49: #{gnnet_forward.1} parent=0 // pred_fallthru
    _
  %v43 = vld [vmem:[%s1] sm:$0xff]
  %v44 = vld [vmem:[%s1 + $0x8] sm:$0xff]
  %v45 = vld [vmem:[%s0] sm:$0xff]
  %v46 = vld [vmem:[%s0 + $0x8] sm:$0xff]
  %v47 = vld [vmem:[%s2] sm:$0xff]
  %v48 = vld [vmem:[%s2 + $0x8] sm:$0xff]
  %v49 = vld [vmem:[%s3] sm:$0x1]
  %vm50 = vcmask 64512
  %v52 = vsel %vm50, %v43, 0
  %54 = vmatpush.msra.mxu0 0.0
  %55 = vmatpush.msra.mxu0 0.0
  %56 = vmatpush.msra.mxu0 0.0
  %57 = vmatpush.msra.mxu0 0.0
  %58 = vmatpush.msra.mxu0 0.0
  %59 = vmatpush.msra.mxu0 0.0
  %60 = vmatpush.msra.mxu0 0.0
  %61 = vmatpush.msra.mxu0 0.0
  %62 = vmatpush.msra.mxu0 0.0
  %63 = vmatpush.msra.mxu0 0.0
  %64 = vmatpush.msra.mxu0 0.0
  %65 = vmatpush.msra.mxu0 0.0
  %66 = vmatpush.msra.mxu0 0.0
  %67 = vmatpush.msra.mxu0 0.0
  %68 = vmatpush.msra.mxu0 0.0
  %69 = vmatpush.msra.mxu0 %v45
  %70 = vmatmul.f32.gmra.mxu0 %v52
  %v71 = vpop.f32.mrf.mxu0
  %v72 = vadd.f32 %v45, %v71
  %73 = vdwg.mxu0
  %v75 = vsel %vm50, %v44, 0
  %77 = vmatpush.msra.mxu0 0.0
  %78 = vmatpush.msra.mxu0 0.0
  %79 = vmatpush.msra.mxu0 0.0
  %80 = vmatpush.msra.mxu0 0.0
  %81 = vmatpush.msra.mxu0 0.0
  %82 = vmatpush.msra.mxu0 0.0
  %83 = vmatpush.msra.mxu0 0.0
  %84 = vmatpush.msra.mxu0 0.0
  %85 = vmatpush.msra.mxu0 0.0
  %86 = vmatpush.msra.mxu0 0.0
  %87 = vmatpush.msra.mxu0 0.0
  %88 = vmatpush.msra.mxu0 0.0
  %89 = vmatpush.msra.mxu0 0.0
  %90 = vmatpush.msra.mxu0 0.0
  %91 = vmatpush.msra.mxu0 0.0
  %92 = vmatpush.msra.mxu0 %v46
  %93 = vmatmul.f32.gmra.mxu0 %v75
  %v94 = vpop.f32.mrf.mxu0
  %v95 = vadd.f32 %v46, %v94
  %96 = vdwg.mxu0
  %v98 = vperm.slane %v49, 0
  %vm100 = vcmask 130048
  %v102 = vsel %vm100, %v72, 0
  %v105 = vsel %vm100, %v95, 0
  %107 = vmatpush.msra.mxu0 0.0
  %108 = vmatpush.msra.mxu0 0.0
  %109 = vmatpush.msra.mxu0 0.0
  %110 = vmatpush.msra.mxu0 0.0
  %111 = vmatpush.msra.mxu0 0.0
  %112 = vmatpush.msra.mxu0 0.0
  %113 = vmatpush.msra.mxu0 0.0
  %114 = vmatpush.msra.mxu0 0.0
  %115 = vmatpush.msra.mxu0 0.0
  %116 = vmatpush.msra.mxu0 0.0
  %117 = vmatpush.msra.mxu0 0.0
  %118 = vmatpush.msra.mxu0 0.0
  %119 = vmatpush.msra.mxu0 0.0
  %120 = vmatpush.msra.mxu0 0.0
  %121 = vmatpush.msra.mxu0 %v48
  %122 = vmatpush.msra.mxu0 %v47
  %123 = vmatmul.f32.gmra.mxu0 %v102
  %v124 = vpop.f32.mrf.mxu0
  %v125 = vadd.f32 %v98, %v124
  %126 = vmatmul.f32.gmra.mxu0 %v105
  %v127 = vpop.f32.mrf.mxu0
  %v128 = vadd.f32 %v98, %v127
  %129 = vdwg.mxu0
  %v130 = vmul.f32 %v125, %v125
  %v131 = vmul.f32 %v128, %v128
  %vm132 = vcmask 261120
  %v133 = vsel %vm132, %v130, 0.0
  %134 = vadd.xlane.f32.xlu0 %v133
  %v135 = vpop.xlane.xlu0 %134
  %v136 = vsel %vm132, %v131, 0.0
  %137 = vadd.xlane.f32.xlu0 %v136
  %v138 = vpop.xlane.xlu0 %137
  %v139 = vmax.f32 %v135, 1e-24
  %v140 = vmax.f32 %v138, 1e-24
  %v141 = vrsqrt.pop %v139
  %v142 = vmul.f32 %v141, %v139
  %v143 = vmul.f32 %v142, %v141
  %v144 = vmul.f32 0.5, %v143
  %v145 = vsub.f32 1.5, %v144
  %v146 = vmul.f32 %v141, %v145
  %vm147 = vweird.f32 %v139
  %vm148 = vweird.f32 %v141
  %vm149 = vmor %vm147, %vm148
  %v150 = vsel %vm149, %v141, %v146
  %v151 = vrsqrt.pop %v140
  %v152 = vmul.f32 %v151, %v140
  %v153 = vmul.f32 %v152, %v151
  %v154 = vmul.f32 0.5, %v153
  %v155 = vsub.f32 1.5, %v154
  %v156 = vmul.f32 %v151, %v155
  %vm157 = vweird.f32 %v140
  %vm158 = vweird.f32 %v151
  %vm159 = vmor %vm157, %vm158
  %v160 = vsel %vm159, %v151, %v156
  %v161 = vmul.f32 %v125, %v150
  %v162 = vmul.f32 %v128, %v160
  %v163 = vmax.f32 %v161, 0.0
  %v164 = vmax.f32 %v162, 0.0
  %v165 = vsel %vm132, %v163, 0.0
  %166 = vadd.xlane.f32.xlu0 %v165
  %v167 = vpop.xlane.xlu0 %166
  %v168 = vsel %vm132, %v164, 0.0
  %169 = vadd.xlane.f32.xlu0 %v168
  %v170 = vpop.xlane.xlu0 %169
  %v171 = vadd.f32 %v167, %v170
  %v172 = vmul.f32 %v171, 0.015625
  %v173 = vsub.f32 %v163, %v172
  %v174 = vsub.f32 %v164, %v172
  %v175 = vmul.f32 %v173, %v173
  %v176 = vmul.f32 %v174, %v174
  %v177 = vsel %vm132, %v175, 0.0
  %178 = vadd.xlane.f32.xlu0 %v177
  %v179 = vpop.xlane.xlu0 %178
  %v180 = vsel %vm132, %v176, 0.0
  %181 = vadd.xlane.f32.xlu0 %v180
  %v182 = vpop.xlane.xlu0 %181
  %v183 = vadd.f32 %v179, %v182
  %v184 = vmul.f32 %v183, 0.015625
  %v185 = vadd.f32 %v184, 1e-05
  %v186 = vrsqrt.pop %v185
  %v187 = vmul.f32 %v186, %v185
  %v188 = vmul.f32 %v187, %v186
  %v189 = vmul.f32 0.5, %v188
  %v190 = vsub.f32 1.5, %v189
  %v191 = vmul.f32 %v186, %v190
  %vm192 = vweird.f32 %v185
  %vm193 = vweird.f32 %v186
  %vm194 = vmor %vm192, %vm193
  %v195 = vsel %vm194, %v186, %v191
  %v196 = vmul.f32 %v173, %v195
  %v197 = vmul.f32 %v174, %v195
  %v198 = vld [vmem:[%s4] sm:$0xff]
  %v199 = vld [vmem:[%s4 + $0x8] sm:$0xff]
  %v200 = vld [vmem:[%s4 + $0x10] sm:$0xff]
  %v201 = vld [vmem:[%s4 + $0x18] sm:$0xff]
  %v202 = vld [vmem:[%s5] sm:$0x1]
  %203 = vmatpush.msra.mxu0 0.0
  %204 = vmatpush.msra.mxu0 0.0
  %205 = vmatpush.msra.mxu0 0.0
  %206 = vmatpush.msra.mxu0 0.0
  %207 = vmatpush.msra.mxu0 0.0
  %208 = vmatpush.msra.mxu0 0.0
  %209 = vmatpush.msra.mxu0 0.0
  %210 = vmatpush.msra.mxu0 0.0
  %211 = vmatpush.msra.mxu0 0.0
  %212 = vmatpush.msra.mxu0 0.0
  %213 = vmatpush.msra.mxu0 0.0
  %214 = vmatpush.msra.mxu0 0.0
  %215 = vmatpush.msra.mxu0 0.0
  %216 = vmatpush.msra.mxu0 0.0
  %217 = vmatpush.msra.mxu0 0.0
  %218 = vmatpush.msra.mxu0 %v196
  %219 = vmatmul.f32.gmra.mxu0 %v52
  %v220 = vpop.f32.mrf.mxu0
  %v221 = vadd.f32 %v196, %v220
  %222 = vdwg.mxu0
  %223 = vmatpush.msra.mxu0 0.0
  %224 = vmatpush.msra.mxu0 0.0
  %225 = vmatpush.msra.mxu0 0.0
  %226 = vmatpush.msra.mxu0 0.0
  %227 = vmatpush.msra.mxu0 0.0
  %228 = vmatpush.msra.mxu0 0.0
  %229 = vmatpush.msra.mxu0 0.0
  %230 = vmatpush.msra.mxu0 0.0
  %231 = vmatpush.msra.mxu0 0.0
  %232 = vmatpush.msra.mxu0 0.0
  %233 = vmatpush.msra.mxu0 0.0
  %234 = vmatpush.msra.mxu0 0.0
  %235 = vmatpush.msra.mxu0 0.0
  %236 = vmatpush.msra.mxu0 0.0
  %237 = vmatpush.msra.mxu0 0.0
  %238 = vmatpush.msra.mxu0 %v197
  %239 = vmatmul.f32.gmra.mxu0 %v75
  %v240 = vpop.f32.mrf.mxu0
  %v241 = vadd.f32 %v197, %v240
  %242 = vdwg.mxu0
  %v244 = vperm.slane %v202, 0
  %v247 = vsel %vm132, %v221, 0
  %v250 = vsel %vm132, %v241, 0
  %252 = vmatpush.msra.mxu0 0.0
  %253 = vmatpush.msra.mxu0 0.0
  %254 = vmatpush.msra.mxu0 0.0
  %255 = vmatpush.msra.mxu0 0.0
  %256 = vmatpush.msra.mxu0 0.0
  %257 = vmatpush.msra.mxu0 0.0
  %258 = vmatpush.msra.mxu0 0.0
  %259 = vmatpush.msra.mxu0 0.0
  %260 = vmatpush.msra.mxu0 0.0
  %261 = vmatpush.msra.mxu0 0.0
  %262 = vmatpush.msra.mxu0 0.0
  %263 = vmatpush.msra.mxu0 0.0
  %264 = vmatpush.msra.mxu0 %v201
  %265 = vmatpush.msra.mxu0 %v200
  %266 = vmatpush.msra.mxu0 %v199
  %267 = vmatpush.msra.mxu0 %v198
  %268 = vmatmul.f32.gmra.mxu0 %v247
  %v269 = vpop.f32.mrf.mxu0
  %v270 = vadd.f32 %v244, %v269
  %271 = vmatmul.f32.gmra.mxu0 %v250
  %v272 = vpop.f32.mrf.mxu0
  %v273 = vadd.f32 %v244, %v272
  %274 = vdwg.mxu0
  %v275 = vmul.f32 %v270, %v270
  %v276 = vmul.f32 %v273, %v273
  %v277 = vsel %vm132, %v275, 0.0
  %278 = vadd.xlane.f32.xlu0 %v277
  %v279 = vpop.xlane.xlu0 %278
  %v280 = vsel %vm132, %v276, 0.0
  %281 = vadd.xlane.f32.xlu0 %v280
  %v282 = vpop.xlane.xlu0 %281
  %v283 = vmax.f32 %v279, 1e-24
  %v284 = vmax.f32 %v282, 1e-24
  %v285 = vrsqrt.pop %v283
  %v286 = vmul.f32 %v285, %v283
  %v287 = vmul.f32 %v286, %v285
  %v288 = vmul.f32 0.5, %v287
  %v289 = vsub.f32 1.5, %v288
  %v290 = vmul.f32 %v285, %v289
  %vm291 = vweird.f32 %v283
  %vm292 = vweird.f32 %v285
  %vm293 = vmor %vm291, %vm292
  %v294 = vsel %vm293, %v285, %v290
  %v295 = vrsqrt.pop %v284
  %v296 = vmul.f32 %v295, %v284
  %v297 = vmul.f32 %v296, %v295
  %v298 = vmul.f32 0.5, %v297
  %v299 = vsub.f32 1.5, %v298
  %v300 = vmul.f32 %v295, %v299
  %vm301 = vweird.f32 %v284
  %vm302 = vweird.f32 %v295
  %vm303 = vmor %vm301, %vm302
  %v304 = vsel %vm303, %v295, %v300
  %v305 = vmul.f32 %v270, %v294
  %v306 = vmul.f32 %v273, %v304
  %v307 = vmax.f32 %v305, 0.0
  %v308 = vmax.f32 %v306, 0.0
  %v309 = vsel %vm132, %v307, 0.0
  %310 = vadd.xlane.f32.xlu0 %v309
  %v311 = vpop.xlane.xlu0 %310
  %v312 = vsel %vm132, %v308, 0.0
  %313 = vadd.xlane.f32.xlu0 %v312
  %v314 = vpop.xlane.xlu0 %313
  %v315 = vadd.f32 %v311, %v314
  %v316 = vmul.f32 %v315, 0.015625
  %v317 = vsub.f32 %v307, %v316
  %v318 = vsub.f32 %v308, %v316
  %v319 = vmul.f32 %v317, %v317
  %v320 = vmul.f32 %v318, %v318
  %v321 = vsel %vm132, %v319, 0.0
  %322 = vadd.xlane.f32.xlu0 %v321
  %v323 = vpop.xlane.xlu0 %322
  %v324 = vsel %vm132, %v320, 0.0
  %325 = vadd.xlane.f32.xlu0 %v324
  %v326 = vpop.xlane.xlu0 %325
  %v327 = vadd.f32 %v323, %v326
  %v328 = vmul.f32 %v327, 0.015625
  %v329 = vadd.f32 %v328, 1e-05
  %v330 = vrsqrt.pop %v329
  %v331 = vmul.f32 %v330, %v329
  %v332 = vmul.f32 %v331, %v330
  %v333 = vmul.f32 0.5, %v332
  %v334 = vsub.f32 1.5, %v333
  %v335 = vmul.f32 %v330, %v334
  %vm336 = vweird.f32 %v329
  %vm337 = vweird.f32 %v330
  %vm338 = vmor %vm336, %vm337
  %v339 = vsel %vm338, %v330, %v335
  %v340 = vmul.f32 %v317, %v339
  %v341 = vmul.f32 %v318, %v339
  %v342 = vld [vmem:[%s6] sm:$0xff]
  %v343 = vld [vmem:[%s6 + $0x8] sm:$0xff]
  %v344 = vld [vmem:[%s6 + $0x10] sm:$0xff]
  %v345 = vld [vmem:[%s6 + $0x18] sm:$0xff]
  %v346 = vld [vmem:[%s7] sm:$0x1]
  %347 = vmatpush.msra.mxu0 0.0
  %348 = vmatpush.msra.mxu0 0.0
  %349 = vmatpush.msra.mxu0 0.0
  %350 = vmatpush.msra.mxu0 0.0
  %351 = vmatpush.msra.mxu0 0.0
  %352 = vmatpush.msra.mxu0 0.0
  %353 = vmatpush.msra.mxu0 0.0
  %354 = vmatpush.msra.mxu0 0.0
  %355 = vmatpush.msra.mxu0 0.0
  %356 = vmatpush.msra.mxu0 0.0
  %357 = vmatpush.msra.mxu0 0.0
  %358 = vmatpush.msra.mxu0 0.0
  %359 = vmatpush.msra.mxu0 0.0
  %360 = vmatpush.msra.mxu0 0.0
  %361 = vmatpush.msra.mxu0 0.0
  %362 = vmatpush.msra.mxu0 %v340
  %363 = vmatmul.f32.gmra.mxu0 %v52
  %v364 = vpop.f32.mrf.mxu0
  %v365 = vadd.f32 %v340, %v364
  %366 = vdwg.mxu0
  %367 = vmatpush.msra.mxu0 0.0
  %368 = vmatpush.msra.mxu0 0.0
  %369 = vmatpush.msra.mxu0 0.0
  %370 = vmatpush.msra.mxu0 0.0
  %371 = vmatpush.msra.mxu0 0.0
  %372 = vmatpush.msra.mxu0 0.0
  %373 = vmatpush.msra.mxu0 0.0
  %374 = vmatpush.msra.mxu0 0.0
  %375 = vmatpush.msra.mxu0 0.0
  %376 = vmatpush.msra.mxu0 0.0
  %377 = vmatpush.msra.mxu0 0.0
  %378 = vmatpush.msra.mxu0 0.0
  %379 = vmatpush.msra.mxu0 0.0
  %380 = vmatpush.msra.mxu0 0.0
  %381 = vmatpush.msra.mxu0 0.0
  %382 = vmatpush.msra.mxu0 %v341
  %383 = vmatmul.f32.gmra.mxu0 %v75
  %v384 = vpop.f32.mrf.mxu0
  %v385 = vadd.f32 %v341, %v384
  %386 = vdwg.mxu0
  %v388 = vperm.slane %v346, 0
  %v391 = vsel %vm132, %v365, 0
  %v394 = vsel %vm132, %v385, 0
  %396 = vmatpush.msra.mxu0 0.0
  %397 = vmatpush.msra.mxu0 0.0
  %398 = vmatpush.msra.mxu0 0.0
  %399 = vmatpush.msra.mxu0 0.0
  %400 = vmatpush.msra.mxu0 0.0
  %401 = vmatpush.msra.mxu0 0.0
  %402 = vmatpush.msra.mxu0 0.0
  %403 = vmatpush.msra.mxu0 0.0
  %404 = vmatpush.msra.mxu0 0.0
  %405 = vmatpush.msra.mxu0 0.0
  %406 = vmatpush.msra.mxu0 0.0
  %407 = vmatpush.msra.mxu0 0.0
  %408 = vmatpush.msra.mxu0 %v345
  %409 = vmatpush.msra.mxu0 %v344
  %410 = vmatpush.msra.mxu0 %v343
  %411 = vmatpush.msra.mxu0 %v342
  %412 = vmatmul.f32.gmra.mxu0 %v391
  %v413 = vpop.f32.mrf.mxu0
  %v414 = vadd.f32 %v388, %v413
  %415 = vmatmul.f32.gmra.mxu0 %v394
  %v416 = vpop.f32.mrf.mxu0
  %v417 = vadd.f32 %v388, %v416
  %418 = vdwg.mxu0
  %v419 = vmul.f32 %v414, %v414
  %v420 = vmul.f32 %v417, %v417
  %v421 = vsel %vm100, %v419, 0.0
  %422 = vadd.xlane.f32.xlu0 %v421
  %v423 = vpop.xlane.xlu0 %422
  %v424 = vsel %vm100, %v420, 0.0
  %425 = vadd.xlane.f32.xlu0 %v424
  %v426 = vpop.xlane.xlu0 %425
  %v427 = vmax.f32 %v423, 1e-24
  %v428 = vmax.f32 %v426, 1e-24
  %v429 = vrsqrt.pop %v427
  %v430 = vmul.f32 %v429, %v427
  %v431 = vmul.f32 %v430, %v429
  %v432 = vmul.f32 0.5, %v431
  %v433 = vsub.f32 1.5, %v432
  %v434 = vmul.f32 %v429, %v433
  %vm435 = vweird.f32 %v427
  %vm436 = vweird.f32 %v429
  %vm437 = vmor %vm435, %vm436
  %v438 = vsel %vm437, %v429, %v434
  %v439 = vrsqrt.pop %v428
  %v440 = vmul.f32 %v439, %v428
  %v441 = vmul.f32 %v440, %v439
  %v442 = vmul.f32 0.5, %v441
  %v443 = vsub.f32 1.5, %v442
  %v444 = vmul.f32 %v439, %v443
  %vm445 = vweird.f32 %v428
  %vm446 = vweird.f32 %v439
  %vm447 = vmor %vm445, %vm446
  %v448 = vsel %vm447, %v439, %v444
  %v449 = vmul.f32 %v414, %v438
  %v450 = vmul.f32 %v417, %v448
  %451 = vst.msk [vmem:[#allocation2] sm:$0xff] %vm100, %v449
  %452 = vst.msk [vmem:[#allocation2 + $0x8] sm:$0xff] %vm100, %v450
  %v453 = vld [vmem:[#allocation2] sm:$0x1]
  %v454 = vld [vmem:[#allocation2 + $0x8] sm:$0x1]
  %v455 = vadd.f32 %v453, 0.0
  %v456 = vadd.f32 %v454, 0.0
  %v457 = vld [vmem:[%s8] sm:$0xff]
  %v458 = vld [vmem:[%s8 + $0x8] sm:$0x3]
  %v459 = vld [vmem:[#allocation2 + $0x1] sm:$0x1]
  %v460 = vld [vmem:[#allocation2 + $0x9] sm:$0x1]
  %v461 = vadd.f32 %v455, %v459
  %v462 = vadd.f32 %v456, %v460
  %s463 = scalar_lea.vmem %s8, 16
  %v464 = vld [vmem:[%s463] sm:$0xff]
  %v465 = vld [vmem:[%s463 + $0x8] sm:$0x3]
  %v468 = vrot.slane %v460, 7
  %vm469 = vcmask 1041409
  %v470 = vsel %vm469, %v468, %v459
  %v471 = vsel %vm100, %v470, 0
  %v474 = vsel %vm100, %v464, 0
  %v477 = vsel %vm100, %v465, 0
  %479 = vmatpush.xpose.msra.mxu0 0.0
  %480 = vmatpush.xpose.msra.mxu0 0.0
  %481 = vmatpush.xpose.msra.mxu0 0.0
  %482 = vmatpush.xpose.msra.mxu0 0.0
  %483 = vmatpush.xpose.msra.mxu0 0.0
  %484 = vmatpush.xpose.msra.mxu0 0.0
  %485 = vmatpush.xpose.msra.mxu0 0.0
  %486 = vmatpush.xpose.msra.mxu0 0.0
  %487 = vmatpush.xpose.msra.mxu0 0.0
  %488 = vmatpush.xpose.msra.mxu0 0.0
  %489 = vmatpush.xpose.msra.mxu0 0.0
  %490 = vmatpush.xpose.msra.mxu0 0.0
  %491 = vmatpush.xpose.msra.mxu0 0.0
  %492 = vmatpush.xpose.msra.mxu0 0.0
  %493 = vmatpush.xpose.msra.mxu0 %v477
  %494 = vmatpush.xpose.msra.mxu0 %v474
  %495 = vmatmul.f32.gmra.mxu0 %v471
  %v496 = vpop.f32.mrf.mxu0
  %v497 = vadd.f32 0.0, %v496
  %498 = vdwg.mxu0
  %v501 = vrot.slane %v454, 7
  %v502 = vsel %vm469, %v501, %v453
  %v503 = vsel %vm100, %v502, 0
  %v506 = vsel %vm100, %v457, 0
  %v509 = vsel %vm100, %v458, 0
  %511 = vmatpush.xpose.msra.mxu0 0.0
  %512 = vmatpush.xpose.msra.mxu0 0.0
  %513 = vmatpush.xpose.msra.mxu0 0.0
  %514 = vmatpush.xpose.msra.mxu0 0.0
  %515 = vmatpush.xpose.msra.mxu0 0.0
  %516 = vmatpush.xpose.msra.mxu0 0.0
  %517 = vmatpush.xpose.msra.mxu0 0.0
  %518 = vmatpush.xpose.msra.mxu0 0.0
  %519 = vmatpush.xpose.msra.mxu0 0.0
  %520 = vmatpush.xpose.msra.mxu0 0.0
  %521 = vmatpush.xpose.msra.mxu0 0.0
  %522 = vmatpush.xpose.msra.mxu0 0.0
  %523 = vmatpush.xpose.msra.mxu0 0.0
  %524 = vmatpush.xpose.msra.mxu0 0.0
  %525 = vmatpush.xpose.msra.mxu0 %v509
  %526 = vmatpush.xpose.msra.mxu0 %v506
  %527 = vmatmul.f32.gmra.mxu0 %v503
  %v528 = vpop.f32.mrf.mxu0
  %v529 = vadd.f32 %v497, %v528
  %530 = vdwg.mxu0
  %v531 = vld [vmem:[#allocation2 + $0x2] sm:$0x1]
  %v532 = vld [vmem:[#allocation2 + $0xa] sm:$0x1]
  %v533 = vadd.f32 %v461, %v531
  %v534 = vadd.f32 %v462, %v532
  %s535 = scalar_lea.vmem %s8, 32
  %v536 = vld [vmem:[%s535] sm:$0xff]
  %v537 = vld [vmem:[%s535 + $0x8] sm:$0x3]
  %v540 = vrot.slane %v532, 7
  %v541 = vsel %vm469, %v540, %v531
  %v542 = vsel %vm100, %v541, 0
  %v545 = vsel %vm100, %v536, 0
  %v548 = vsel %vm100, %v537, 0
  %550 = vmatpush.xpose.msra.mxu0 0.0
  %551 = vmatpush.xpose.msra.mxu0 0.0
  %552 = vmatpush.xpose.msra.mxu0 0.0
  %553 = vmatpush.xpose.msra.mxu0 0.0
  %554 = vmatpush.xpose.msra.mxu0 0.0
  %555 = vmatpush.xpose.msra.mxu0 0.0
  %556 = vmatpush.xpose.msra.mxu0 0.0
  %557 = vmatpush.xpose.msra.mxu0 0.0
  %558 = vmatpush.xpose.msra.mxu0 0.0
  %559 = vmatpush.xpose.msra.mxu0 0.0
  %560 = vmatpush.xpose.msra.mxu0 0.0
  %561 = vmatpush.xpose.msra.mxu0 0.0
  %562 = vmatpush.xpose.msra.mxu0 0.0
  %563 = vmatpush.xpose.msra.mxu0 0.0
  %564 = vmatpush.xpose.msra.mxu0 %v548
  %565 = vmatpush.xpose.msra.mxu0 %v545
  %566 = vmatmul.f32.gmra.mxu0 %v542
  %v567 = vpop.f32.mrf.mxu0
  %v568 = vadd.f32 0.0, %v567
  %569 = vdwg.mxu0
  %v570 = vadd.f32 %v529, %v568
  %v571 = vld [vmem:[#allocation2 + $0x3] sm:$0x1]
  %v572 = vld [vmem:[#allocation2 + $0xb] sm:$0x1]
  %v573 = vadd.f32 %v533, %v571
  %v574 = vadd.f32 %v534, %v572
  %s575 = scalar_lea.vmem %s8, 48
  %v576 = vld [vmem:[%s575] sm:$0xff]
  %v577 = vld [vmem:[%s575 + $0x8] sm:$0x3]
  %v580 = vrot.slane %v572, 7
  %v581 = vsel %vm469, %v580, %v571
  %v582 = vsel %vm100, %v581, 0
  %v585 = vsel %vm100, %v576, 0
  %v588 = vsel %vm100, %v577, 0
  %590 = vmatpush.xpose.msra.mxu0 0.0
  %591 = vmatpush.xpose.msra.mxu0 0.0
  %592 = vmatpush.xpose.msra.mxu0 0.0
  %593 = vmatpush.xpose.msra.mxu0 0.0
  %594 = vmatpush.xpose.msra.mxu0 0.0
  %595 = vmatpush.xpose.msra.mxu0 0.0
  %596 = vmatpush.xpose.msra.mxu0 0.0
  %597 = vmatpush.xpose.msra.mxu0 0.0
  %598 = vmatpush.xpose.msra.mxu0 0.0
  %599 = vmatpush.xpose.msra.mxu0 0.0
  %600 = vmatpush.xpose.msra.mxu0 0.0
  %601 = vmatpush.xpose.msra.mxu0 0.0
  %602 = vmatpush.xpose.msra.mxu0 0.0
  %603 = vmatpush.xpose.msra.mxu0 0.0
  %604 = vmatpush.xpose.msra.mxu0 %v588
  %605 = vmatpush.xpose.msra.mxu0 %v585
  %606 = vmatmul.f32.gmra.mxu0 %v582
  %v607 = vpop.f32.mrf.mxu0
  %v608 = vadd.f32 0.0, %v607
  %609 = vdwg.mxu0
  %v610 = vadd.f32 %v570, %v608
  %v611 = vld [vmem:[#allocation2 + $0x4] sm:$0x1]
  %v612 = vld [vmem:[#allocation2 + $0xc] sm:$0x1]
  %v613 = vadd.f32 %v573, %v611
  %v614 = vadd.f32 %v574, %v612
  %s615 = scalar_lea.vmem %s8, 64
  %v616 = vld [vmem:[%s615] sm:$0xff]
  %v617 = vld [vmem:[%s615 + $0x8] sm:$0x3]
  %v620 = vrot.slane %v612, 7
  %v621 = vsel %vm469, %v620, %v611
  %v622 = vsel %vm100, %v621, 0
  %v625 = vsel %vm100, %v616, 0
  %v628 = vsel %vm100, %v617, 0
  %630 = vmatpush.xpose.msra.mxu0 0.0
  %631 = vmatpush.xpose.msra.mxu0 0.0
  %632 = vmatpush.xpose.msra.mxu0 0.0
  %633 = vmatpush.xpose.msra.mxu0 0.0
  %634 = vmatpush.xpose.msra.mxu0 0.0
  %635 = vmatpush.xpose.msra.mxu0 0.0
  %636 = vmatpush.xpose.msra.mxu0 0.0
  %637 = vmatpush.xpose.msra.mxu0 0.0
  %638 = vmatpush.xpose.msra.mxu0 0.0
  %639 = vmatpush.xpose.msra.mxu0 0.0
  %640 = vmatpush.xpose.msra.mxu0 0.0
  %641 = vmatpush.xpose.msra.mxu0 0.0
  %642 = vmatpush.xpose.msra.mxu0 0.0
  %643 = vmatpush.xpose.msra.mxu0 0.0
  %644 = vmatpush.xpose.msra.mxu0 %v628
  %645 = vmatpush.xpose.msra.mxu0 %v625
  %646 = vmatmul.f32.gmra.mxu0 %v622
  %v647 = vpop.f32.mrf.mxu0
  %v648 = vadd.f32 0.0, %v647
  %649 = vdwg.mxu0
  %v650 = vadd.f32 %v610, %v648
  %v651 = vld [vmem:[#allocation2 + $0x5] sm:$0x1]
  %v652 = vld [vmem:[#allocation2 + $0xd] sm:$0x1]
  %v653 = vadd.f32 %v613, %v651
  %v654 = vadd.f32 %v614, %v652
  %s655 = scalar_lea.vmem %s8, 80
  %v656 = vld [vmem:[%s655] sm:$0xff]
  %v657 = vld [vmem:[%s655 + $0x8] sm:$0x3]
  %v660 = vrot.slane %v652, 7
  %v661 = vsel %vm469, %v660, %v651
  %v662 = vsel %vm100, %v661, 0
  %v665 = vsel %vm100, %v656, 0
  %v668 = vsel %vm100, %v657, 0
  %670 = vmatpush.xpose.msra.mxu0 0.0
  %671 = vmatpush.xpose.msra.mxu0 0.0
  %672 = vmatpush.xpose.msra.mxu0 0.0
  %673 = vmatpush.xpose.msra.mxu0 0.0
  %674 = vmatpush.xpose.msra.mxu0 0.0
  %675 = vmatpush.xpose.msra.mxu0 0.0
  %676 = vmatpush.xpose.msra.mxu0 0.0
  %677 = vmatpush.xpose.msra.mxu0 0.0
  %678 = vmatpush.xpose.msra.mxu0 0.0
  %679 = vmatpush.xpose.msra.mxu0 0.0
  %680 = vmatpush.xpose.msra.mxu0 0.0
  %681 = vmatpush.xpose.msra.mxu0 0.0
  %682 = vmatpush.xpose.msra.mxu0 0.0
  %683 = vmatpush.xpose.msra.mxu0 0.0
  %684 = vmatpush.xpose.msra.mxu0 %v668
  %685 = vmatpush.xpose.msra.mxu0 %v665
  %686 = vmatmul.f32.gmra.mxu0 %v662
  %v687 = vpop.f32.mrf.mxu0
  %v688 = vadd.f32 0.0, %v687
  %689 = vdwg.mxu0
  %v690 = vadd.f32 %v650, %v688
  %v691 = vld [vmem:[#allocation2 + $0x6] sm:$0x1]
  %v692 = vld [vmem:[#allocation2 + $0xe] sm:$0x1]
  %v693 = vadd.f32 %v653, %v691
  %v694 = vadd.f32 %v654, %v692
  %s695 = scalar_lea.vmem %s8, 96
  %v696 = vld [vmem:[%s695] sm:$0xff]
  %v697 = vld [vmem:[%s695 + $0x8] sm:$0x3]
  %v700 = vrot.slane %v692, 7
  %v701 = vsel %vm469, %v700, %v691
  %v702 = vsel %vm100, %v701, 0
  %v705 = vsel %vm100, %v696, 0
  %v708 = vsel %vm100, %v697, 0
  %710 = vmatpush.xpose.msra.mxu0 0.0
  %711 = vmatpush.xpose.msra.mxu0 0.0
  %712 = vmatpush.xpose.msra.mxu0 0.0
  %713 = vmatpush.xpose.msra.mxu0 0.0
  %714 = vmatpush.xpose.msra.mxu0 0.0
  %715 = vmatpush.xpose.msra.mxu0 0.0
  %716 = vmatpush.xpose.msra.mxu0 0.0
  %717 = vmatpush.xpose.msra.mxu0 0.0
  %718 = vmatpush.xpose.msra.mxu0 0.0
  %719 = vmatpush.xpose.msra.mxu0 0.0
  %720 = vmatpush.xpose.msra.mxu0 0.0
  %721 = vmatpush.xpose.msra.mxu0 0.0
  %722 = vmatpush.xpose.msra.mxu0 0.0
  %723 = vmatpush.xpose.msra.mxu0 0.0
  %724 = vmatpush.xpose.msra.mxu0 %v708
  %725 = vmatpush.xpose.msra.mxu0 %v705
  %726 = vmatmul.f32.gmra.mxu0 %v702
  %v727 = vpop.f32.mrf.mxu0
  %v728 = vadd.f32 0.0, %v727
  %729 = vdwg.mxu0
  %v730 = vadd.f32 %v690, %v728
  %v731 = vld [vmem:[#allocation2 + $0x7] sm:$0x1]
  %v732 = vld [vmem:[#allocation2 + $0xf] sm:$0x1]
  %v733 = vadd.f32 %v693, %v731
  %v734 = vadd.f32 %v694, %v732
  %s735 = scalar_lea.vmem %s8, 112
  %v736 = vld [vmem:[%s735] sm:$0xff]
  %v737 = vld [vmem:[%s735 + $0x8] sm:$0x3]
  %v740 = vrot.slane %v732, 7
  %v741 = vsel %vm469, %v740, %v731
  %v742 = vsel %vm100, %v741, 0
  %v745 = vsel %vm100, %v736, 0
  %v748 = vsel %vm100, %v737, 0
  %750 = vmatpush.xpose.msra.mxu0 0.0
  %751 = vmatpush.xpose.msra.mxu0 0.0
  %752 = vmatpush.xpose.msra.mxu0 0.0
  %753 = vmatpush.xpose.msra.mxu0 0.0
  %754 = vmatpush.xpose.msra.mxu0 0.0
  %755 = vmatpush.xpose.msra.mxu0 0.0
  %756 = vmatpush.xpose.msra.mxu0 0.0
  %757 = vmatpush.xpose.msra.mxu0 0.0
  %758 = vmatpush.xpose.msra.mxu0 0.0
  %759 = vmatpush.xpose.msra.mxu0 0.0
  %760 = vmatpush.xpose.msra.mxu0 0.0
  %761 = vmatpush.xpose.msra.mxu0 0.0
  %762 = vmatpush.xpose.msra.mxu0 0.0
  %763 = vmatpush.xpose.msra.mxu0 0.0
  %764 = vmatpush.xpose.msra.mxu0 %v748
  %765 = vmatpush.xpose.msra.mxu0 %v745
  %766 = vmatmul.f32.gmra.mxu0 %v742
  %v767 = vpop.f32.mrf.mxu0
  %v768 = vadd.f32 0.0, %v767
  %769 = vdwg.mxu0
  %v770 = vadd.f32 %v730, %v768
  %v771 = vmul.f32 %v733, 0.125
  %v772 = vmul.f32 %v734, 0.125
  %vm773 = vcmask 74752
  %v774 = vsel %vm773, %v770, -inf
  %775 = vmax.xlane.f32.xlu0 %v774
  %v776 = vpop.xlane.xlu0 %775
  %v777 = vsub.f32 %v770, %v776
  %v778 = vmul.f32 %v777, 1.442695
  %v779 = vpow.pop %v778
  %v780 = vsel %vm773, %v779, 0.0
  %781 = vadd.xlane.f32.xlu0 %v780
  %v782 = vpop.xlane.xlu0 %781
  %v783 = vrcp.pop %v782
  %v784 = vmul.f32 %v782, %v783
  %v785 = vsub.f32 1.0, %v784
  %v786 = vmul.f32 %v783, %v785
  %v787 = vadd.f32 %v783, %v786
  %vm788 = vweird.f32 %v782
  %vm789 = vweird.f32 %v783
  %vm790 = vmor %vm788, %vm789
  %v791 = vsel %vm790, %v783, %v787
  %v792 = vand.u32 2147483647, %v782
  %vm793 = vcmp.eq.f32.partialorder %v792, 8.507059e+37
  %v794 = vand.u32 %v782, 2147483648
  %v795 = vor.u32 1.1754944e-38, %v794
  %v796 = vsel %vm793, %v795, %v791
  %v797 = vmul.f32 %v779, %v796
  %v798 = vsub.f32 %v797, 0.02
  %v799 = vmax.f32 %v798, 0.0
  %v800 = vmul.f32 %v799, %v797
  %v801 = vand.u32 2147483647, %v798
  %v802 = vadd.f32 %v801, 1e-12
  %v803 = vrcp.pop %v802
  %v804 = vmul.f32 %v802, %v803
  %v805 = vsub.f32 1.0, %v804
  %v806 = vmul.f32 %v803, %v805
  %v807 = vadd.f32 %v803, %v806
  %vm808 = vweird.f32 %v802
  %vm809 = vweird.f32 %v803
  %vm810 = vmor %vm808, %vm809
  %v811 = vsel %vm810, %v803, %v807
  %v812 = vand.u32 2147483647, %v802
  %vm813 = vcmp.eq.f32.partialorder %v812, 8.507059e+37
  %v814 = vand.u32 %v802, 2147483648
  %v815 = vor.u32 1.1754944e-38, %v814
  %v816 = vsel %vm813, %v815, %v811
  %v817 = vmul.f32 %v800, %v816
  %v818 = vand.u32 2147483647, %v817
  %v819 = vsel %vm773, %v818, 0.0
  %820 = vadd.xlane.f32.xlu0 %v819
  %v821 = vpop.xlane.xlu0 %820
  %v822 = vmax.f32 %v821, 1e-12
  %v823 = vrcp.pop %v822
  %v824 = vmul.f32 %v822, %v823
  %v825 = vsub.f32 1.0, %v824
  %v826 = vmul.f32 %v823, %v825
  %v827 = vadd.f32 %v823, %v826
  %vm828 = vweird.f32 %v822
  %vm829 = vweird.f32 %v823
  %vm830 = vmor %vm828, %vm829
  %v831 = vsel %vm830, %v823, %v827
  %v832 = vand.u32 2147483647, %v822
  %vm833 = vcmp.eq.f32.partialorder %v832, 8.507059e+37
  %v834 = vand.u32 %v822, 2147483648
  %v835 = vor.u32 1.1754944e-38, %v834
  %v836 = vsel %vm833, %v835, %v831
  %v837 = vmul.f32 %v817, %v836
  %v838 = vld [vmem:[%s9] sm:$0x3f]
  %v841 = vrot.slane %v772, 7
  %v842 = vsel %vm469, %v841, %v771
  %v843 = vsel %vm100, %v842, 0
  %v846 = vsel %vm100, %v838, 0
  %848 = vmatpush.xpose.msra.mxu0 0.0
  %849 = vmatpush.xpose.msra.mxu0 0.0
  %850 = vmatpush.xpose.msra.mxu0 0.0
  %851 = vmatpush.xpose.msra.mxu0 0.0
  %852 = vmatpush.xpose.msra.mxu0 0.0
  %853 = vmatpush.xpose.msra.mxu0 0.0
  %854 = vmatpush.xpose.msra.mxu0 0.0
  %855 = vmatpush.xpose.msra.mxu0 0.0
  %856 = vmatpush.xpose.msra.mxu0 0.0
  %857 = vmatpush.xpose.msra.mxu0 0.0
  %858 = vmatpush.xpose.msra.mxu0 0.0
  %859 = vmatpush.xpose.msra.mxu0 0.0
  %860 = vmatpush.xpose.msra.mxu0 0.0
  %861 = vmatpush.xpose.msra.mxu0 0.0
  %862 = vmatpush.xpose.msra.mxu0 0.0
  %863 = vmatpush.xpose.msra.mxu0 %v846
  %864 = vmatmul.f32.gmra.mxu0 %v843
  %v865 = vpop.f32.mrf.mxu0
  %v866 = vadd.f32 0.0, %v865
  %867 = vdwg.mxu0
  %vm868 = vcmask 41984
  %v869 = vsel %vm868, %v866, -inf
  %870 = vmax.xlane.f32.xlu0 %v869
  %v871 = vpop.xlane.xlu0 %870
  %v872 = vsub.f32 %v866, %v871
  %v873 = vmul.f32 %v872, 1.442695
  %v874 = vpow.pop %v873
  %v875 = vsel %vm868, %v874, 0.0
  %876 = vadd.xlane.f32.xlu0 %v875
  %v877 = vpop.xlane.xlu0 %876
  %v878 = vrcp.pop %v877
  %v879 = vmul.f32 %v877, %v878
  %v880 = vsub.f32 1.0, %v879
  %v881 = vmul.f32 %v878, %v880
  %v882 = vadd.f32 %v878, %v881
  %vm883 = vweird.f32 %v877
  %vm884 = vweird.f32 %v878
  %vm885 = vmor %vm883, %vm884
  %v886 = vsel %vm885, %v878, %v882
  %v887 = vand.u32 2147483647, %v877
  %vm888 = vcmp.eq.f32.partialorder %v887, 8.507059e+37
  %v889 = vand.u32 %v877, 2147483648
  %v890 = vor.u32 1.1754944e-38, %v889
  %v891 = vsel %vm888, %v890, %v886
  %v892 = vmul.f32 %v874, %v891
  %v893 = vsub.f32 %v892, 0.033333335
  %v894 = vmax.f32 %v893, 0.0
  %v895 = vmul.f32 %v894, %v892
  %v896 = vand.u32 2147483647, %v893
  %v897 = vadd.f32 %v896, 1e-12
  %v898 = vrcp.pop %v897
  %v899 = vmul.f32 %v897, %v898
  %v900 = vsub.f32 1.0, %v899
  %v901 = vmul.f32 %v898, %v900
  %v902 = vadd.f32 %v898, %v901
  %vm903 = vweird.f32 %v897
  %vm904 = vweird.f32 %v898
  %vm905 = vmor %vm903, %vm904
  %v906 = vsel %vm905, %v898, %v902
  %v907 = vand.u32 2147483647, %v897
  %vm908 = vcmp.eq.f32.partialorder %v907, 8.507059e+37
  %v909 = vand.u32 %v897, 2147483648
  %v910 = vor.u32 1.1754944e-38, %v909
  %v911 = vsel %vm908, %v910, %v906
  %v912 = vmul.f32 %v895, %v911
  %v913 = vand.u32 2147483647, %v912
  %v914 = vsel %vm868, %v913, 0.0
  %915 = vadd.xlane.f32.xlu0 %v914
  %v916 = vpop.xlane.xlu0 %915
  %v917 = vmax.f32 %v916, 1e-12
  %v918 = vrcp.pop %v917
  %v919 = vmul.f32 %v917, %v918
  %v920 = vsub.f32 1.0, %v919
  %v921 = vmul.f32 %v918, %v920
  %v922 = vadd.f32 %v918, %v921
  %vm923 = vweird.f32 %v917
  %vm924 = vweird.f32 %v918
  %vm925 = vmor %vm923, %vm924
  %v926 = vsel %vm925, %v918, %v922
  %v927 = vand.u32 2147483647, %v917
  %vm928 = vcmp.eq.f32.partialorder %v927, 8.507059e+37
  %v929 = vand.u32 %v917, 2147483648
  %v930 = vor.u32 1.1754944e-38, %v929
  %v931 = vsel %vm928, %v930, %v926
  %v932 = vmul.f32 %v912, %v931
  %vm933 = vcmask 48128
  %v935 = vsel %vm933, %v932, 0
  %vm937 = vcmask 1045504
  %v938 = vsel %vm937, %v838, 0
  %940 = vmatpush.msra.mxu0 0.0
  %941 = vmatpush.msra.mxu0 0.0
  %942 = vmatpush.msra.mxu0 0.0
  %943 = vmatpush.msra.mxu0 0.0
  %944 = vmatpush.msra.mxu0 0.0
  %945 = vmatpush.msra.mxu0 0.0
  %946 = vmatpush.msra.mxu0 0.0
  %947 = vmatpush.msra.mxu0 0.0
  %948 = vmatpush.msra.mxu0 0.0
  %949 = vmatpush.msra.mxu0 0.0
  %950 = vmatpush.msra.mxu0 0.0
  %951 = vmatpush.msra.mxu0 0.0
  %952 = vmatpush.msra.mxu0 0.0
  %953 = vmatpush.msra.mxu0 0.0
  %954 = vmatpush.msra.mxu0 0.0
  %955 = vmatpush.msra.mxu0 %v938
  %956 = vmatmul.f32.gmra.mxu0 %v935
  %v957 = vpop.f32.mrf.mxu0
  %v958 = vadd.f32 0.0, %v957
  %959 = vdwg.mxu0
  %vm960 = vcmask 80896
  %v962 = vsel %vm960, %v837, 0
  %vm964 = vcmask 1041408
  %v965 = vsel %vm964, %v458, 0
  %967 = vmatpush.msra.mxu0 0.0
  %968 = vmatpush.msra.mxu0 0.0
  %969 = vmatpush.msra.mxu0 0.0
  %970 = vmatpush.msra.mxu0 0.0
  %971 = vmatpush.msra.mxu0 0.0
  %972 = vmatpush.msra.mxu0 0.0
  %973 = vmatpush.msra.mxu0 0.0
  %974 = vmatpush.msra.mxu0 0.0
  %975 = vmatpush.msra.mxu0 0.0
  %976 = vmatpush.msra.mxu0 0.0
  %977 = vmatpush.msra.mxu0 0.0
  %978 = vmatpush.msra.mxu0 0.0
  %979 = vmatpush.msra.mxu0 0.0
  %980 = vmatpush.msra.mxu0 0.0
  %981 = vmatpush.msra.mxu0 %v965
  %982 = vmatpush.msra.mxu0 %v457
  %983 = vmatmul.f32.gmra.mxu0 %v962
  %v984 = vpop.f32.mrf.mxu0
  %v985 = vadd.f32 0.0, %v984
  %986 = vdwg.mxu0
  %v988 = vrot.slane %v985, 1
  %vm990 = vcmask 122880
  %991 = vst.msk [vmem:[#allocation3] sm:$0x1] %vm990, %v985
  %992 = vst.msk [vmem:[#allocation3 + $0x8] sm:$0x1] %vm990, %v988
  %v993 = vld [vmem:[%s463] sm:$0xff]
  %v994 = vld [vmem:[%s463 + $0x8] sm:$0x3]
  %v996 = vsel %vm964, %v994, 0
  %998 = vmatpush.msra.mxu0 0.0
  %999 = vmatpush.msra.mxu0 0.0
  %1000 = vmatpush.msra.mxu0 0.0
  %1001 = vmatpush.msra.mxu0 0.0
  %1002 = vmatpush.msra.mxu0 0.0
  %1003 = vmatpush.msra.mxu0 0.0
  %1004 = vmatpush.msra.mxu0 0.0
  %1005 = vmatpush.msra.mxu0 0.0
  %1006 = vmatpush.msra.mxu0 0.0
  %1007 = vmatpush.msra.mxu0 0.0
  %1008 = vmatpush.msra.mxu0 0.0
  %1009 = vmatpush.msra.mxu0 0.0
  %1010 = vmatpush.msra.mxu0 0.0
  %1011 = vmatpush.msra.mxu0 0.0
  %1012 = vmatpush.msra.mxu0 %v996
  %1013 = vmatpush.msra.mxu0 %v993
  %1014 = vmatmul.f32.gmra.mxu0 %v962
  %v1015 = vpop.f32.mrf.mxu0
  %v1016 = vadd.f32 0.0, %v1015
  %1017 = vdwg.mxu0
  %v1019 = vrot.slane %v1016, 1
  %1021 = vst.msk [vmem:[#allocation3 + $0x1] sm:$0x1] %vm990, %v1016
  %1022 = vst.msk [vmem:[#allocation3 + $0x9] sm:$0x1] %vm990, %v1019
  %v1023 = vld [vmem:[%s535] sm:$0xff]
  %v1024 = vld [vmem:[%s535 + $0x8] sm:$0x3]
  %v1026 = vsel %vm964, %v1024, 0
  %1028 = vmatpush.msra.mxu0 0.0
  %1029 = vmatpush.msra.mxu0 0.0
  %1030 = vmatpush.msra.mxu0 0.0
  %1031 = vmatpush.msra.mxu0 0.0
  %1032 = vmatpush.msra.mxu0 0.0
  %1033 = vmatpush.msra.mxu0 0.0
  %1034 = vmatpush.msra.mxu0 0.0
  %1035 = vmatpush.msra.mxu0 0.0
  %1036 = vmatpush.msra.mxu0 0.0
  %1037 = vmatpush.msra.mxu0 0.0
  %1038 = vmatpush.msra.mxu0 0.0
  %1039 = vmatpush.msra.mxu0 0.0
  %1040 = vmatpush.msra.mxu0 0.0
  %1041 = vmatpush.msra.mxu0 0.0
  %1042 = vmatpush.msra.mxu0 %v1026
  %1043 = vmatpush.msra.mxu0 %v1023
  %1044 = vmatmul.f32.gmra.mxu0 %v962
  %v1045 = vpop.f32.mrf.mxu0
  %v1046 = vadd.f32 0.0, %v1045
  %1047 = vdwg.mxu0
  %v1049 = vrot.slane %v1046, 1
  %1051 = vst.msk [vmem:[#allocation3 + $0x2] sm:$0x1] %vm990, %v1046
  %1052 = vst.msk [vmem:[#allocation3 + $0xa] sm:$0x1] %vm990, %v1049
  %v1053 = vld [vmem:[%s575] sm:$0xff]
  %v1054 = vld [vmem:[%s575 + $0x8] sm:$0x3]
  %v1056 = vsel %vm964, %v1054, 0
  %1058 = vmatpush.msra.mxu0 0.0
  %1059 = vmatpush.msra.mxu0 0.0
  %1060 = vmatpush.msra.mxu0 0.0
  %1061 = vmatpush.msra.mxu0 0.0
  %1062 = vmatpush.msra.mxu0 0.0
  %1063 = vmatpush.msra.mxu0 0.0
  %1064 = vmatpush.msra.mxu0 0.0
  %1065 = vmatpush.msra.mxu0 0.0
  %1066 = vmatpush.msra.mxu0 0.0
  %1067 = vmatpush.msra.mxu0 0.0
  %1068 = vmatpush.msra.mxu0 0.0
  %1069 = vmatpush.msra.mxu0 0.0
  %1070 = vmatpush.msra.mxu0 0.0
  %1071 = vmatpush.msra.mxu0 0.0
  %1072 = vmatpush.msra.mxu0 %v1056
  %1073 = vmatpush.msra.mxu0 %v1053
  %1074 = vmatmul.f32.gmra.mxu0 %v962
  %v1075 = vpop.f32.mrf.mxu0
  %v1076 = vadd.f32 0.0, %v1075
  %1077 = vdwg.mxu0
  %v1079 = vrot.slane %v1076, 1
  %1081 = vst.msk [vmem:[#allocation3 + $0x3] sm:$0x1] %vm990, %v1076
  %1082 = vst.msk [vmem:[#allocation3 + $0xb] sm:$0x1] %vm990, %v1079
  %v1083 = vld [vmem:[%s615] sm:$0xff]
  %v1084 = vld [vmem:[%s615 + $0x8] sm:$0x3]
  %v1086 = vsel %vm964, %v1084, 0
  %1088 = vmatpush.msra.mxu0 0.0
  %1089 = vmatpush.msra.mxu0 0.0
  %1090 = vmatpush.msra.mxu0 0.0
  %1091 = vmatpush.msra.mxu0 0.0
  %1092 = vmatpush.msra.mxu0 0.0
  %1093 = vmatpush.msra.mxu0 0.0
  %1094 = vmatpush.msra.mxu0 0.0
  %1095 = vmatpush.msra.mxu0 0.0
  %1096 = vmatpush.msra.mxu0 0.0
  %1097 = vmatpush.msra.mxu0 0.0
  %1098 = vmatpush.msra.mxu0 0.0
  %1099 = vmatpush.msra.mxu0 0.0
  %1100 = vmatpush.msra.mxu0 0.0
  %1101 = vmatpush.msra.mxu0 0.0
  %1102 = vmatpush.msra.mxu0 %v1086
  %1103 = vmatpush.msra.mxu0 %v1083
  %1104 = vmatmul.f32.gmra.mxu0 %v962
  %v1105 = vpop.f32.mrf.mxu0
  %v1106 = vadd.f32 0.0, %v1105
  %1107 = vdwg.mxu0
  %v1109 = vrot.slane %v1106, 1
  %1111 = vst.msk [vmem:[#allocation3 + $0x4] sm:$0x1] %vm990, %v1106
  %1112 = vst.msk [vmem:[#allocation3 + $0xc] sm:$0x1] %vm990, %v1109
  %v1113 = vld [vmem:[%s655] sm:$0xff]
  %v1114 = vld [vmem:[%s655 + $0x8] sm:$0x3]
  %v1116 = vsel %vm964, %v1114, 0
  %1118 = vmatpush.msra.mxu0 0.0
  %1119 = vmatpush.msra.mxu0 0.0
  %1120 = vmatpush.msra.mxu0 0.0
  %1121 = vmatpush.msra.mxu0 0.0
  %1122 = vmatpush.msra.mxu0 0.0
  %1123 = vmatpush.msra.mxu0 0.0
  %1124 = vmatpush.msra.mxu0 0.0
  %1125 = vmatpush.msra.mxu0 0.0
  %1126 = vmatpush.msra.mxu0 0.0
  %1127 = vmatpush.msra.mxu0 0.0
  %1128 = vmatpush.msra.mxu0 0.0
  %1129 = vmatpush.msra.mxu0 0.0
  %1130 = vmatpush.msra.mxu0 0.0
  %1131 = vmatpush.msra.mxu0 0.0
  %1132 = vmatpush.msra.mxu0 %v1116
  %1133 = vmatpush.msra.mxu0 %v1113
  %1134 = vmatmul.f32.gmra.mxu0 %v962
  %v1135 = vpop.f32.mrf.mxu0
  %v1136 = vadd.f32 0.0, %v1135
  %1137 = vdwg.mxu0
  %v1139 = vrot.slane %v1136, 1
  %1141 = vst.msk [vmem:[#allocation3 + $0x5] sm:$0x1] %vm990, %v1136
  %1142 = vst.msk [vmem:[#allocation3 + $0xd] sm:$0x1] %vm990, %v1139
  %v1143 = vld [vmem:[%s695] sm:$0xff]
  %v1144 = vld [vmem:[%s695 + $0x8] sm:$0x3]
  %v1146 = vsel %vm964, %v1144, 0
  %1148 = vmatpush.msra.mxu0 0.0
  %1149 = vmatpush.msra.mxu0 0.0
  %1150 = vmatpush.msra.mxu0 0.0
  %1151 = vmatpush.msra.mxu0 0.0
  %1152 = vmatpush.msra.mxu0 0.0
  %1153 = vmatpush.msra.mxu0 0.0
  %1154 = vmatpush.msra.mxu0 0.0
  %1155 = vmatpush.msra.mxu0 0.0
  %1156 = vmatpush.msra.mxu0 0.0
  %1157 = vmatpush.msra.mxu0 0.0
  %1158 = vmatpush.msra.mxu0 0.0
  %1159 = vmatpush.msra.mxu0 0.0
  %1160 = vmatpush.msra.mxu0 0.0
  %1161 = vmatpush.msra.mxu0 0.0
  %1162 = vmatpush.msra.mxu0 %v1146
  %1163 = vmatpush.msra.mxu0 %v1143
  %1164 = vmatmul.f32.gmra.mxu0 %v962
  %v1165 = vpop.f32.mrf.mxu0
  %v1166 = vadd.f32 0.0, %v1165
  %1167 = vdwg.mxu0
  %v1169 = vrot.slane %v1166, 1
  %1171 = vst.msk [vmem:[#allocation3 + $0x6] sm:$0x1] %vm990, %v1166
  %1172 = vst.msk [vmem:[#allocation3 + $0xe] sm:$0x1] %vm990, %v1169
  %v1173 = vld [vmem:[%s735] sm:$0xff]
  %v1174 = vld [vmem:[%s735 + $0x8] sm:$0x3]
  %v1176 = vsel %vm964, %v1174, 0
  %1178 = vmatpush.msra.mxu0 0.0
  %1179 = vmatpush.msra.mxu0 0.0
  %1180 = vmatpush.msra.mxu0 0.0
  %1181 = vmatpush.msra.mxu0 0.0
  %1182 = vmatpush.msra.mxu0 0.0
  %1183 = vmatpush.msra.mxu0 0.0
  %1184 = vmatpush.msra.mxu0 0.0
  %1185 = vmatpush.msra.mxu0 0.0
  %1186 = vmatpush.msra.mxu0 0.0
  %1187 = vmatpush.msra.mxu0 0.0
  %1188 = vmatpush.msra.mxu0 0.0
  %1189 = vmatpush.msra.mxu0 0.0
  %1190 = vmatpush.msra.mxu0 0.0
  %1191 = vmatpush.msra.mxu0 0.0
  %1192 = vmatpush.msra.mxu0 %v1176
  %1193 = vmatpush.msra.mxu0 %v1173
  %1194 = vmatmul.f32.gmra.mxu0 %v962
  %v1195 = vpop.f32.mrf.mxu0
  %v1196 = vadd.f32 0.0, %v1195
  %1197 = vdwg.mxu0
  %v1199 = vrot.slane %v1196, 1
  %1201 = vst.msk [vmem:[#allocation3 + $0x7] sm:$0x1] %vm990, %v1196
  %1202 = vst.msk [vmem:[#allocation3 + $0xf] sm:$0x1] %vm990, %v1199
  %v1203 = vld [vmem:[#allocation3] sm:$0xff]
  %v1204 = vld [vmem:[#allocation3 + $0x8] sm:$0xff]
  %1205 = vmatpush.msra.mxu0 0.0
  %1206 = vmatpush.msra.mxu0 0.0
  %1207 = vmatpush.msra.mxu0 0.0
  %1208 = vmatpush.msra.mxu0 0.0
  %1209 = vmatpush.msra.mxu0 0.0
  %1210 = vmatpush.msra.mxu0 0.0
  %1211 = vmatpush.msra.mxu0 0.0
  %1212 = vmatpush.msra.mxu0 0.0
  %1213 = vmatpush.msra.mxu0 0.0
  %1214 = vmatpush.msra.mxu0 0.0
  %1215 = vmatpush.msra.mxu0 0.0
  %1216 = vmatpush.msra.mxu0 0.0
  %1217 = vmatpush.msra.mxu0 0.0
  %1218 = vmatpush.msra.mxu0 0.0
  %1219 = vmatpush.msra.mxu0 0.0
  %1220 = vmatpush.msra.mxu0 %v1203
  %1221 = vmatmul.f32.gmra.mxu0 %v52
  %v1222 = vpop.f32.mrf.mxu0
  %v1223 = vadd.f32 0.0, %v1222
  %1224 = vdwg.mxu0
  %1225 = vmatpush.msra.mxu0 0.0
  %1226 = vmatpush.msra.mxu0 0.0
  %1227 = vmatpush.msra.mxu0 0.0
  %1228 = vmatpush.msra.mxu0 0.0
  %1229 = vmatpush.msra.mxu0 0.0
  %1230 = vmatpush.msra.mxu0 0.0
  %1231 = vmatpush.msra.mxu0 0.0
  %1232 = vmatpush.msra.mxu0 0.0
  %1233 = vmatpush.msra.mxu0 0.0
  %1234 = vmatpush.msra.mxu0 0.0
  %1235 = vmatpush.msra.mxu0 0.0
  %1236 = vmatpush.msra.mxu0 0.0
  %1237 = vmatpush.msra.mxu0 0.0
  %1238 = vmatpush.msra.mxu0 0.0
  %1239 = vmatpush.msra.mxu0 0.0
  %1240 = vmatpush.msra.mxu0 %v1204
  %1241 = vmatmul.f32.gmra.mxu0 %v75
  %v1242 = vpop.f32.mrf.mxu0
  %v1243 = vadd.f32 0.0, %v1242
  %1244 = vdwg.mxu0
  %v1245 = vld [vmem:[%s10] sm:$0xff]
  %v1246 = vld [vmem:[%s10 + $0x8] sm:$0xff]
  %v1248 = vsel %vm100, %v1223, 0
  %v1251 = vsel %vm100, %v1243, 0
  %1253 = vmatpush.msra.mxu0 0.0
  %1254 = vmatpush.msra.mxu0 0.0
  %1255 = vmatpush.msra.mxu0 0.0
  %1256 = vmatpush.msra.mxu0 0.0
  %1257 = vmatpush.msra.mxu0 0.0
  %1258 = vmatpush.msra.mxu0 0.0
  %1259 = vmatpush.msra.mxu0 0.0
  %1260 = vmatpush.msra.mxu0 0.0
  %1261 = vmatpush.msra.mxu0 0.0
  %1262 = vmatpush.msra.mxu0 0.0
  %1263 = vmatpush.msra.mxu0 0.0
  %1264 = vmatpush.msra.mxu0 0.0
  %1265 = vmatpush.msra.mxu0 0.0
  %1266 = vmatpush.msra.mxu0 0.0
  %1267 = vmatpush.msra.mxu0 %v1246
  %1268 = vmatpush.msra.mxu0 %v1245
  %1269 = vmatmul.f32.gmra.mxu0 %v1248
  %v1270 = vpop.f32.mrf.mxu0
  %v1271 = vadd.f32 0.0, %v1270
  %1272 = vmatmul.f32.gmra.mxu0 %v1251
  %v1273 = vpop.f32.mrf.mxu0
  %v1274 = vadd.f32 0.0, %v1273
  %1275 = vdwg.mxu0
  %vm1276 = vcmp.ge.f32.partialorder %v1271, 0.0
  %vm1277 = vcmp.ge.f32.partialorder %v1274, 0.0
  %v1278 = vmul.f32 %v1271, 0.01
  %v1279 = vmul.f32 %v1274, 0.01
  %v1280 = vsel %vm1276, %v1271, %v1278
  %v1281 = vsel %vm1277, %v1274, %v1279
  %1282 = vmatpush.msra.mxu0 0.0
  %1283 = vmatpush.msra.mxu0 0.0
  %1284 = vmatpush.msra.mxu0 0.0
  %1285 = vmatpush.msra.mxu0 0.0
  %1286 = vmatpush.msra.mxu0 0.0
  %1287 = vmatpush.msra.mxu0 0.0
  %1288 = vmatpush.msra.mxu0 0.0
  %1289 = vmatpush.msra.mxu0 0.0
  %1290 = vmatpush.msra.mxu0 0.0
  %1291 = vmatpush.msra.mxu0 0.0
  %1292 = vmatpush.msra.mxu0 0.0
  %1293 = vmatpush.msra.mxu0 0.0
  %1294 = vmatpush.msra.mxu0 0.0
  %1295 = vmatpush.msra.mxu0 0.0
  %1296 = vmatpush.msra.mxu0 0.0
  %1297 = vmatpush.msra.mxu0 %v1280
  %1298 = vmatmul.f32.gmra.mxu0 %v52
  %v1299 = vpop.f32.mrf.mxu0
  %v1300 = vadd.f32 0.0, %v1299
  %1301 = vdwg.mxu0
  %1302 = vmatpush.msra.mxu0 0.0
  %1303 = vmatpush.msra.mxu0 0.0
  %1304 = vmatpush.msra.mxu0 0.0
  %1305 = vmatpush.msra.mxu0 0.0
  %1306 = vmatpush.msra.mxu0 0.0
  %1307 = vmatpush.msra.mxu0 0.0
  %1308 = vmatpush.msra.mxu0 0.0
  %1309 = vmatpush.msra.mxu0 0.0
  %1310 = vmatpush.msra.mxu0 0.0
  %1311 = vmatpush.msra.mxu0 0.0
  %1312 = vmatpush.msra.mxu0 0.0
  %1313 = vmatpush.msra.mxu0 0.0
  %1314 = vmatpush.msra.mxu0 0.0
  %1315 = vmatpush.msra.mxu0 0.0
  %1316 = vmatpush.msra.mxu0 0.0
  %1317 = vmatpush.msra.mxu0 %v1281
  %1318 = vmatmul.f32.gmra.mxu0 %v75
  %v1319 = vpop.f32.mrf.mxu0
  %v1320 = vadd.f32 0.0, %v1319
  %1321 = vdwg.mxu0
  %v1322 = vld [vmem:[%s11] sm:$0xff]
  %v1323 = vld [vmem:[%s11 + $0x8] sm:$0xff]
  %v1324 = vld [vmem:[%s11 + $0x10] sm:$0xff]
  %v1325 = vld [vmem:[%s11 + $0x18] sm:$0xff]
  %v1327 = vsel %vm132, %v1300, 0
  %v1330 = vsel %vm132, %v1320, 0
  %1332 = vmatpush.msra.mxu0 0.0
  %1333 = vmatpush.msra.mxu0 0.0
  %1334 = vmatpush.msra.mxu0 0.0
  %1335 = vmatpush.msra.mxu0 0.0
  %1336 = vmatpush.msra.mxu0 0.0
  %1337 = vmatpush.msra.mxu0 0.0
  %1338 = vmatpush.msra.mxu0 0.0
  %1339 = vmatpush.msra.mxu0 0.0
  %1340 = vmatpush.msra.mxu0 0.0
  %1341 = vmatpush.msra.mxu0 0.0
  %1342 = vmatpush.msra.mxu0 0.0
  %1343 = vmatpush.msra.mxu0 0.0
  %1344 = vmatpush.msra.mxu0 %v1325
  %1345 = vmatpush.msra.mxu0 %v1324
  %1346 = vmatpush.msra.mxu0 %v1323
  %1347 = vmatpush.msra.mxu0 %v1322
  %1348 = vmatmul.f32.gmra.mxu0 %v1327
  %v1349 = vpop.f32.mrf.mxu0
  %v1350 = vadd.f32 0.0, %v1349
  %1351 = vmatmul.f32.gmra.mxu0 %v1330
  %v1352 = vpop.f32.mrf.mxu0
  %v1353 = vadd.f32 0.0, %v1352
  %1354 = vdwg.mxu0
  %v1356 = vsel %vm100, %v1203, 0
  %1358 = vmatpush.xpose.msra.mxu0 0.0
  %1359 = vmatpush.xpose.msra.mxu0 0.0
  %1360 = vmatpush.xpose.msra.mxu0 0.0
  %1361 = vmatpush.xpose.msra.mxu0 0.0
  %1362 = vmatpush.xpose.msra.mxu0 0.0
  %1363 = vmatpush.xpose.msra.mxu0 0.0
  %1364 = vmatpush.xpose.msra.mxu0 0.0
  %1365 = vmatpush.xpose.msra.mxu0 0.0
  %1366 = vmatpush.xpose.msra.mxu0 0.0
  %1367 = vmatpush.xpose.msra.mxu0 0.0
  %1368 = vmatpush.xpose.msra.mxu0 0.0
  %1369 = vmatpush.xpose.msra.mxu0 0.0
  %1370 = vmatpush.xpose.msra.mxu0 0.0
  %1371 = vmatpush.xpose.msra.mxu0 0.0
  %1372 = vmatpush.xpose.msra.mxu0 0.0
  %1373 = vmatpush.xpose.msra.mxu0 %v1356
  %1374 = vmatmul.f32.gmra.mxu0 %v1356
  %v1375 = vpop.f32.mrf.mxu0
  %v1376 = vadd.f32 0.0, %v1375
  %1377 = vdwg.mxu0
  %v1379 = vsel %vm100, %v1204, 0
  %1381 = vmatpush.xpose.msra.mxu0 0.0
  %1382 = vmatpush.xpose.msra.mxu0 0.0
  %1383 = vmatpush.xpose.msra.mxu0 0.0
  %1384 = vmatpush.xpose.msra.mxu0 0.0
  %1385 = vmatpush.xpose.msra.mxu0 0.0
  %1386 = vmatpush.xpose.msra.mxu0 0.0
  %1387 = vmatpush.xpose.msra.mxu0 0.0
  %1388 = vmatpush.xpose.msra.mxu0 0.0
  %1389 = vmatpush.xpose.msra.mxu0 0.0
  %1390 = vmatpush.xpose.msra.mxu0 0.0
  %1391 = vmatpush.xpose.msra.mxu0 0.0
  %1392 = vmatpush.xpose.msra.mxu0 0.0
  %1393 = vmatpush.xpose.msra.mxu0 0.0
  %1394 = vmatpush.xpose.msra.mxu0 0.0
  %1395 = vmatpush.xpose.msra.mxu0 0.0
  %1396 = vmatpush.xpose.msra.mxu0 %v1379
  %1397 = vmatmul.f32.gmra.mxu0 %v1379
  %v1398 = vpop.f32.mrf.mxu0
  %v1399 = vadd.f32 0.0, %v1398
  %1400 = vdwg.mxu0
  %v1401 = vmax.f32 %v1376, 0.0
  %v1402 = vmax.f32 %v1399, 0.0
  %1403 = vst.msk [vmem:[%s12] sm:$0xff] %vm100, %v1350
  %1404 = vst.msk [vmem:[%s12 + $0x8] sm:$0xff] %vm100, %v1353
  %1407 = vrot.lane.b32.xlu0 %v1401, 16
  %v1408 = vpop.permute.xlu0 %1407
  %1409 = vrot.lane.b32.xlu0 %v1402, 16
  %v1410 = vpop.permute.xlu0 %1409
  %vm1413 = vcmask 195712
  %1414 = vst.msk [vmem:[%s12] sm:$0xff] %vm1413, %v1408
  %1415 = vst.msk [vmem:[%s12 + $0x8] sm:$0xff] %vm1413, %v1410
  %1416 = vst.msk [vmem:[%s13] sm:$0x3] %vm773, %v837
  %1417 = vrot.lane.b32.xlu0 %v932, 10
  %v1418 = vpop.permute.xlu0 %1417
  %vm1420 = vcmask 123984
  %1421 = vst.msk [vmem:[%s13] sm:$0x3] %vm1420, %v1418
  %1422 = vrot.lane.b32.xlu0 %v842, 16
  %v1423 = vpop.permute.xlu0 %1422
  %vm1425 = vcmask 255104
  %1426 = vst.msk [vmem:[%s13] sm:$0x3] %vm1425, %v1423
  %1428 = vrot.lane.b32.xlu0 %v958, 32
  %v1429 = vpop.permute.xlu0 %1428
  %vm1431 = vcmask 386304
  %1432 = vst.msk [vmem:[%s13] sm:$0x3] %vm1431, %v1429
  // Predicated region
  $region50: #{gnnet_forward.1} parent=0 // pred_check
    _
  $region51: #{gnnet_forward.1} parent=0 // pred_check_branch
    %1434 = sbr.rel (0) target = $region53
  $region52: #{gnnet_forward.1} parent=0 // pred_region
    _
  $region53: #{gnnet_forward.1} parent=0 // pred_fallthru
    _
  // Predicated region
  $region54: #{gnnet_forward.1} parent=0 // pred_check
    _
  $region55: #{gnnet_forward.1} parent=0 // pred_check_branch
    %1436 = sbr.rel (0) target = $region57
  $region56: #{gnnet_forward.1} parent=0 // pred_region
    _
  $region57: #{gnnet_forward.1} parent=0 // pred_fallthru
    _
  // Predicated region
  $region58: #{gnnet_forward.1} parent=0 // pred_check
    _
  $region59: #{gnnet_forward.1} parent=0 // pred_check_branch
    %1438 = sbr.rel (0) target = $region61
  $region60: #{gnnet_forward.1} parent=0 // pred_region
    _
  $region61: #{gnnet_forward.1} parent=0 // pred_fallthru
    _
  // Predicated region
  $region62: #{gnnet_forward.1} parent=0 // pred_check
    _
  $region63: #{gnnet_forward.1} parent=0 // pred_check_branch
    %1440 = sbr.rel (0) target = $region65
  $region64: #{gnnet_forward.1} parent=0 // pred_region
    _
  $region65: #{gnnet_forward.1} parent=0 // pred_fallthru
    _

</llo_original>
